<compile_context>
chip_gen: v7x
topology: tpu7x:2x2x1
jax: 0.10.0
libtpu: 0.0.40
codegen_flags: <defaults>
</compile_context>

<pallas_src>
import functools

import jax
import jax.numpy as jnp
from jax.experimental import pallas as pl
from jax.experimental.pallas import tpu as pltpu


def _round_up(x, m):
    return ((x + m - 1) // m) * m


def _use_bf16_exp():
    """bf16 EUP/VPU exists on v6e/v7x; keep transcendentals in f32 on older TPUs."""
    try:
        kind = jax.devices()[0].device_kind.lower()
        return not any(tag in kind for tag in ("v2", "v3", "v4", "v5"))
    except Exception:  # pragma: no cover - conservative fallback
        return False


def _choose_tile_b(batch, requested):
    """Pick a sublane-aligned batch tile; prefer an even-length grid for v7x."""
    tile = max(16, min(_round_up(requested, 16), _round_up(batch, 16)))
    grid = pl.cdiv(batch, tile)
    if grid % 2 == 1 and batch > 16:
        tile2 = max(16, _round_up(pl.cdiv(batch, grid + 1), 16))
        if pl.cdiv(batch, tile2) % 2 == 0:
            tile = tile2
    return tile


def vae_forward_kernel(x_ref, eps_ref,
                       w1_ref, b1_ref,
                       w2_ref, b2_ref,
                       w3_ref, b3_ref,
                       y_ref, mu_ref, logvar_ref, z_ref,
                       *, bf16_exp):
    z_dim = mu_ref.shape[-1]
    exp_dtype = jnp.bfloat16 if bf16_exp else jnp.float32

    def _softmax_lastdim(a):
        # Numerically-stable softmax over the last axis (== torch dim=1 for 2-D).
        # exp runs on the EUP (bf16 on v6e/v7x); sum / normalization stay f32.
        m = jnp.max(a, axis=-1, keepdims=True)
        e = jnp.exp((a - m).astype(exp_dtype)).astype(jnp.float32)
        # NOTE: approx reciprocal -> rows sum to 1 within ~1e-3; use an exact
        # divide here if downstream needs exact normalization.
        return e * pl.reciprocal(jnp.sum(e, axis=-1, keepdims=True), approx=True)

    # encode: h1 = relu(x @ W1 + b1)   (bf16 operands, f32 accumulate, f32 bias)
    h1 = jnp.dot(x_ref[...], w1_ref[...],
                 preferred_element_type=jnp.float32) + b1_ref[...]
    h1 = jnp.maximum(h1, 0.0)

    # fused fc21 || fc22 : one f32 matmul (tiny), lane-aligned slices for mu/log_var
    enc = jnp.dot(h1, w2_ref[...],
                  preferred_element_type=jnp.float32) + b2_ref[...]
    mu = enc[:, :z_dim]
    log_var = enc[:, z_dim:]

    # reparameterize: std = exp(log_var / 2); h = mu + eps * std   (f32)
    std = jnp.exp(log_var * 0.5)
    h = mu + eps_ref[...] * std

    # decode: z = softmax(h); y = softmax(z @ W3 + b3)
    z = _softmax_lastdim(h)
    logits = jnp.dot(z.astype(jnp.bfloat16), w3_ref[...],
                     preferred_element_type=jnp.float32) + b3_ref[...]
    y = _softmax_lastdim(logits)

    y_ref[...] = y.astype(y_ref.dtype)
    mu_ref[...] = mu
    logvar_ref[...] = log_var
    z_ref[...] = z


def init_vae_params(key, input_size, h_dim, z_dim):
    """Deterministic init mimicking nn.Linear default: U(-1/sqrt(in), 1/sqrt(in)).
    Weights stored already transposed as [in, out], f32 master copies."""
    def lin(k, fan_in, fan_out):
        kw, kb = jax.random.split(k)
        bound = 1.0 / jnp.sqrt(fan_in)
        w = jax.random.uniform(kw, (fan_in, fan_out), jnp.float32, -bound, bound)
        b = jax.random.uniform(kb, (1, fan_out), jnp.float32, -bound, bound)
        return w, b

    k1, k21, k22, k3 = jax.random.split(key, 4)
    return {
        "fc1": lin(k1, input_size, h_dim),
        "fc21": lin(k21, h_dim, z_dim),
        "fc22": lin(k22, h_dim, z_dim),
        "fc3": lin(k3, z_dim, input_size),
    }


def pack_vae_params(params):
    """One-time weight prep: fuse fc21||fc22 and cast MXU-streamed weights to bf16.
    Call once at init, NOT per forward (avoids per-call concat/convert launches)."""
    w1, b1 = params["fc1"]
    w21, b21 = params["fc21"]
    w22, b22 = params["fc22"]
    w3, b3 = params["fc3"]
    return {
        "w1": w1.astype(jnp.bfloat16),                 # [in, h]  bf16 MXU operand
        "b1": b1,                                      # [1, h]   f32
        "w2": jnp.concatenate([w21, w22], axis=1),     # [h, 2z]  f32 (tiny, accuracy)
        "b2": jnp.concatenate([b21, b22], axis=1),     # [1, 2z]  f32
        "w3": w3.astype(jnp.bfloat16),                 # [z, in]  bf16 MXU operand
        "b3": b3,                                      # [1, in]  f32
        "dims": (int(w1.shape[0]), int(w1.shape[1]), int(w21.shape[1])),
    }


def vae_forward(packed, x, eps, *, tile_b=512, y_dtype=jnp.bfloat16):
    """h1_samples == 1 path of VAE.forward.  Returns (y, mu, log_var, z)."""
    # TODO(synk): h1_samples > 1 path returns Python lists of per-sample tensors;
    # express it by calling this kernel once per epsilon sample.
    input_size, h_dim, z_dim = packed["dims"]
    B = x.shape[0]

    # Stream x in bf16 (it only feeds the bf16 MXU op); eps stays f32 (VPU math).
    x = x.astype(jnp.bfloat16)
    eps = eps.astype(jnp.float32)

    tile_b = _choose_tile_b(B, tile_b)
    grid = (pl.cdiv(B, tile_b),)   # no host-side padding; Pallas masks the edge tile

    act_spec = lambda f: pl.BlockSpec((tile_b, f), lambda i: (i, 0))
    res_spec = lambda r, c: pl.BlockSpec((r, c), lambda i: (0, 0))   # VMEM-resident

    in_specs = [
        act_spec(input_size),            # x (bf16)
        act_spec(z_dim),                 # eps (f32)
        res_spec(input_size, h_dim),     # w1 (bf16)
        res_spec(1, h_dim),              # b1
        res_spec(h_dim, 2 * z_dim),      # w2 fused (f32)
        res_spec(1, 2 * z_dim),          # b2 fused
        res_spec(z_dim, input_size),     # w3 (bf16)
        res_spec(1, input_size),         # b3
    ]
    out_specs = (
        act_spec(input_size),            # y
        act_spec(z_dim),                 # mu
        act_spec(z_dim),                 # log_var
        act_spec(z_dim),                 # z
    )
    out_shapes = (
        jax.ShapeDtypeStruct((B, input_size), y_dtype),
        jax.ShapeDtypeStruct((B, z_dim), jnp.float32),
        jax.ShapeDtypeStruct((B, z_dim), jnp.float32),
        jax.ShapeDtypeStruct((B, z_dim), jnp.float32),
    )

    flops = 2 * B * (input_size * h_dim + h_dim * 2 * z_dim + z_dim * input_size)
    transcendentals = B * (3 * z_dim + input_size)     # std exp + z softmax + y softmax
    bytes_accessed = (
        2 * x.size + 4 * eps.size
        + B * input_size * jnp.dtype(y_dtype).itemsize
        + 4 * B * 3 * z_dim
        + 2 * (packed["w1"].size + packed["w3"].size)
        + 4 * packed["w2"].size
        + 4 * (packed["b1"].size + packed["b2"].size + packed["b3"].size)
    )

    kernel = functools.partial(vae_forward_kernel, bf16_exp=_use_bf16_exp())

    y, mu, log_var, z = pl.pallas_call(
        kernel,
        out_shape=out_shapes,
        grid=grid,
        in_specs=in_specs,
        out_specs=out_specs,
        compiler_params=pltpu.CompilerParams(
            dimension_semantics=("parallel",),
        ),
        cost_estimate=pl.CostEstimate(
            flops=flops,
            transcendentals=transcendentals,
            bytes_accessed=bytes_accessed,
        ),
    )(x, eps,
      packed["w1"], packed["b1"],
      packed["w2"], packed["b2"],
      packed["w3"], packed["b3"])

    return y, mu, log_var, z


def vae_forward_ref(params, x, eps):
    """Pure-JAX f32 reference for correctness check."""
    w1, b1 = params["fc1"]
    w21, b21 = params["fc21"]
    w22, b22 = params["fc22"]
    w3, b3 = params["fc3"]
    h1 = jax.nn.relu(x @ w1 + b1)
    mu = h1 @ w21 + b21
    log_var = h1 @ w22 + b22
    std = jnp.exp(log_var / 2.0)
    h = mu + eps * std
    z = jax.nn.softmax(h, axis=1)
    y = jax.nn.softmax(z @ w3 + b3, axis=1)
    return y, mu, log_var, z


if __name__ == "__main__":
    # Small shapes consistent with the module's Linear stack, (8,128)-aligned.
    # B=256 -> tile chooser picks 128-row tiles (even 2-step grid for v7x TCs).
    B, input_size, h_dim, z_dim = 256, 256, 128, 128

    key = jax.random.PRNGKey(0)
    kp, kx, ke = jax.random.split(key, 3)

    params = init_vae_params(kp, input_size, h_dim, z_dim)
    packed = pack_vae_params(params)        # one-time weight prep, reused per call
    x = jax.random.normal(kx, (B, input_size), jnp.float32)
    # epsilon ~ N(0, 1) (generated in the wrapper so the kernel is deterministic)
    eps = jax.random.normal(ke, (B, z_dim), jnp.float32)

    y, mu, log_var, z = vae_forward(packed, x, eps)
    jax.block_until_ready((y, mu, log_var, z))

    y_r, mu_r, lv_r, z_r = vae_forward_ref(params, x, eps)
    # Tolerances relaxed for bf16 matmul operands, bf16 y output, approx reciprocal.
    assert jnp.allclose(y.astype(jnp.float32), y_r, atol=2e-2, rtol=2e-2)
    assert jnp.allclose(mu, mu_r, atol=2e-2, rtol=2e-2)
    assert jnp.allclose(log_var, lv_r, atol=2e-2, rtol=2e-2)
    assert jnp.allclose(z, z_r, atol=2e-2, rtol=2e-2)

    print("KERNEL_OK")
</pallas_src>

<mosaic_0001>
module attributes {stable_mosaic.version = 11 : i64} {
  func.func @vae_forward_kernel(%arg0: i32, %arg1: memref<128x256xbf16, #tpu.memory_space<vmem>>, %arg2: memref<128x128xf32, #tpu.memory_space<vmem>>, %arg3: memref<256x128xbf16, #tpu.memory_space<vmem>>, %arg4: memref<1x128xf32, #tpu.memory_space<vmem>>, %arg5: memref<128x256xf32, #tpu.memory_space<vmem>>, %arg6: memref<1x256xf32, #tpu.memory_space<vmem>>, %arg7: memref<128x256xbf16, #tpu.memory_space<vmem>>, %arg8: memref<1x256xf32, #tpu.memory_space<vmem>>, %arg9: memref<128x256xbf16, #tpu.memory_space<vmem>>, %arg10: memref<128x128xf32, #tpu.memory_space<vmem>>, %arg11: memref<128x128xf32, #tpu.memory_space<vmem>>, %arg12: memref<128x128xf32, #tpu.memory_space<vmem>>) attributes {dimension_semantics = [#tpu.dimension_semantics<parallel>], iteration_bounds = array<i64: 2>, scalar_prefetch = 0 : i64, scratch_operands = 0 : i64, tpu.core_type = #tpu.core_type<tc>, window_params = [{transform_indices = @transform_0, window_bounds = array<i64: 128, 256>}, {transform_indices = @transform_1, window_bounds = array<i64: 128, 128>}, {pipeline_mode = #tpu.pipeline_mode<synchronous>, transform_indices = @transform_2, window_bounds = array<i64: 256, 128>}, {pipeline_mode = #tpu.pipeline_mode<synchronous>, transform_indices = @transform_3, window_bounds = array<i64: 1, 128>}, {pipeline_mode = #tpu.pipeline_mode<synchronous>, transform_indices = @transform_4, window_bounds = array<i64: 128, 256>}, {pipeline_mode = #tpu.pipeline_mode<synchronous>, transform_indices = @transform_5, window_bounds = array<i64: 1, 256>}, {pipeline_mode = #tpu.pipeline_mode<synchronous>, transform_indices = @transform_6, window_bounds = array<i64: 128, 256>}, {pipeline_mode = #tpu.pipeline_mode<synchronous>, transform_indices = @transform_7, window_bounds = array<i64: 1, 256>}, {transform_indices = @transform_8, window_bounds = array<i64: 128, 256>}, {transform_indices = @transform_9, window_bounds = array<i64: 128, 128>}, {transform_indices = @transform_10, window_bounds = array<i64: 128, 128>}, {transform_indices = @transform_11, window_bounds = array<i64: 128, 128>}]} {
    %c0 = arith.constant 0 : index
    %c0_0 = arith.constant 0 : index
    %0 = vector.load %arg1[%c0, %c0_0] : memref<128x256xbf16, #tpu.memory_space<vmem>>, vector<128x256xbf16>
    %c0_1 = arith.constant 0 : index
    %c0_2 = arith.constant 0 : index
    %1 = vector.load %arg3[%c0_1, %c0_2] : memref<256x128xbf16, #tpu.memory_space<vmem>>, vector<256x128xbf16>
    %cst = arith.constant dense<0.000000e+00> : vector<128x128xf32>
    %2 = tpu.matmul %0, %1, %cst {dimension_numbers = #tpu.dot_dimension_numbers<[1], [0], [0], [1], [0, 0, 1, 1], [], []>} : vector<128x256xbf16>, vector<256x128xbf16>, vector<128x128xf32> -> vector<128x128xf32>
    %c0_3 = arith.constant 0 : index
    %c0_4 = arith.constant 0 : index
    %3 = vector.load %arg4[%c0_3, %c0_4] : memref<1x128xf32, #tpu.memory_space<vmem>>, vector<1x128xf32>
    %4 = vector.broadcast %3 : vector<1x128xf32> to vector<128x128xf32>
    %5 = arith.addf %2, %4 : vector<128x128xf32>
    %cst_5 = arith.constant 0.000000e+00 : f32
    %6 = vector.broadcast %cst_5 : f32 to vector<128x128xf32>
    %7 = arith.maximumf %5, %6 : vector<128x128xf32>
    %c0_6 = arith.constant 0 : index
    %c0_7 = arith.constant 0 : index
    %8 = vector.load %arg5[%c0_6, %c0_7] : memref<128x256xf32, #tpu.memory_space<vmem>>, vector<128x256xf32>
    %cst_8 = arith.constant dense<0.000000e+00> : vector<128x256xf32>
    %9 = tpu.matmul %7, %8, %cst_8 {dimension_numbers = #tpu.dot_dimension_numbers<[1], [0], [0], [1], [0, 0, 1, 1], [], []>} : vector<128x128xf32>, vector<128x256xf32>, vector<128x256xf32> -> vector<128x256xf32>
    %c0_9 = arith.constant 0 : index
    %c0_10 = arith.constant 0 : index
    %10 = vector.load %arg6[%c0_9, %c0_10] : memref<1x256xf32, #tpu.memory_space<vmem>>, vector<1x256xf32>
    %11 = vector.broadcast %10 : vector<1x256xf32> to vector<128x256xf32>
    %12 = arith.addf %9, %11 : vector<128x256xf32>
    %13 = vector.extract_strided_slice %12 {offsets = [0, 0], sizes = [128, 128], strides = [1, 1]} : vector<128x256xf32> to vector<128x128xf32>
    %14 = vector.extract_strided_slice %12 {offsets = [0, 128], sizes = [128, 128], strides = [1, 1]} : vector<128x256xf32> to vector<128x128xf32>
    %cst_11 = arith.constant 5.000000e-01 : f32
    %15 = vector.broadcast %cst_11 : f32 to vector<128x128xf32>
    %16 = arith.mulf %14, %15 : vector<128x128xf32>
    %17 = math.exp %16 : vector<128x128xf32>
    %c0_12 = arith.constant 0 : index
    %c0_13 = arith.constant 0 : index
    %18 = vector.load %arg2[%c0_12, %c0_13] : memref<128x128xf32, #tpu.memory_space<vmem>>, vector<128x128xf32>
    %19 = arith.mulf %18, %17 : vector<128x128xf32>
    %20 = arith.addf %13, %19 : vector<128x128xf32>
    %cst_14 = arith.constant dense<0xFF800000> : vector<128xf32>
    %21 = vector.multi_reduction <maximumf>, %20, %cst_14 [1] : vector<128x128xf32> to vector<128xf32>
    %22 = vector.shape_cast %21 : vector<128xf32> to vector<128x1xf32>
    %23 = vector.broadcast %22 : vector<128x1xf32> to vector<128x128xf32>
    %24 = arith.subf %20, %23 : vector<128x128xf32>
    %25 = arith.truncf %24 : vector<128x128xf32> to vector<128x128xbf16>
    %26 = math.exp %25 : vector<128x128xbf16>
    %27 = arith.extf %26 : vector<128x128xbf16> to vector<128x128xf32>
    %cst_15 = arith.constant dense<0.000000e+00> : vector<128xf32>
    %28 = vector.multi_reduction <add>, %27, %cst_15 [1] : vector<128x128xf32> to vector<128xf32>
    %29 = vector.shape_cast %28 : vector<128xf32> to vector<128x1xf32>
    %30 = tpu.reciprocal %29 {approx = true} : vector<128x1xf32> -> vector<128x1xf32>
    %31 = vector.broadcast %30 : vector<128x1xf32> to vector<128x128xf32>
    %32 = arith.mulf %27, %31 : vector<128x128xf32>
    %33 = arith.truncf %32 : vector<128x128xf32> to vector<128x128xbf16>
    %c0_16 = arith.constant 0 : index
    %c0_17 = arith.constant 0 : index
    %34 = vector.load %arg7[%c0_16, %c0_17] : memref<128x256xbf16, #tpu.memory_space<vmem>>, vector<128x256xbf16>
    %cst_18 = arith.constant dense<0.000000e+00> : vector<128x256xf32>
    %35 = tpu.matmul %33, %34, %cst_18 {dimension_numbers = #tpu.dot_dimension_numbers<[1], [0], [0], [1], [0, 0, 1, 1], [], []>} : vector<128x128xbf16>, vector<128x256xbf16>, vector<128x256xf32> -> vector<128x256xf32>
    %c0_19 = arith.constant 0 : index
    %c0_20 = arith.constant 0 : index
    %36 = vector.load %arg8[%c0_19, %c0_20] : memref<1x256xf32, #tpu.memory_space<vmem>>, vector<1x256xf32>
    %37 = vector.broadcast %36 : vector<1x256xf32> to vector<128x256xf32>
    %38 = arith.addf %35, %37 : vector<128x256xf32>
    %cst_21 = arith.constant dense<0xFF800000> : vector<128xf32>
    %39 = vector.multi_reduction <maximumf>, %38, %cst_21 [1] : vector<128x256xf32> to vector<128xf32>
    %40 = vector.shape_cast %39 : vector<128xf32> to vector<128x1xf32>
    %41 = vector.broadcast %40 : vector<128x1xf32> to vector<128x256xf32>
    %42 = arith.subf %38, %41 : vector<128x256xf32>
    %43 = arith.truncf %42 : vector<128x256xf32> to vector<128x256xbf16>
    %44 = math.exp %43 : vector<128x256xbf16>
    %45 = arith.extf %44 : vector<128x256xbf16> to vector<128x256xf32>
    %cst_22 = arith.constant dense<0.000000e+00> : vector<128xf32>
    %46 = vector.multi_reduction <add>, %45, %cst_22 [1] : vector<128x256xf32> to vector<128xf32>
    %47 = vector.shape_cast %46 : vector<128xf32> to vector<128x1xf32>
    %48 = tpu.reciprocal %47 {approx = true} : vector<128x1xf32> -> vector<128x1xf32>
    %49 = vector.broadcast %48 : vector<128x1xf32> to vector<128x256xf32>
    %50 = arith.mulf %45, %49 : vector<128x256xf32>
    %51 = arith.truncf %50 : vector<128x256xf32> to vector<128x256xbf16>
    %c0_23 = arith.constant 0 : index
    %c0_24 = arith.constant 0 : index
    %52 = vector.load %arg9[%c0_23, %c0_24] : memref<128x256xbf16, #tpu.memory_space<vmem>>, vector<128x256xbf16>
    tpu.vector_store %arg9[%c0_23, %c0_24], %51 {strides = array<i32>} : memref<128x256xbf16, #tpu.memory_space<vmem>>, vector<128x256xbf16>,
    %c0_25 = arith.constant 0 : index
    %c0_26 = arith.constant 0 : index
    %53 = vector.load %arg10[%c0_25, %c0_26] : memref<128x128xf32, #tpu.memory_space<vmem>>, vector<128x128xf32>
    tpu.vector_store %arg10[%c0_25, %c0_26], %13 {strides = array<i32>} : memref<128x128xf32, #tpu.memory_space<vmem>>, vector<128x128xf32>,
    %c0_27 = arith.constant 0 : index
    %c0_28 = arith.constant 0 : index
    %54 = vector.load %arg11[%c0_27, %c0_28] : memref<128x128xf32, #tpu.memory_space<vmem>>, vector<128x128xf32>
    tpu.vector_store %arg11[%c0_27, %c0_28], %14 {strides = array<i32>} : memref<128x128xf32, #tpu.memory_space<vmem>>, vector<128x128xf32>,
    %c0_29 = arith.constant 0 : index
    %c0_30 = arith.constant 0 : index
    %55 = vector.load %arg12[%c0_29, %c0_30] : memref<128x128xf32, #tpu.memory_space<vmem>>, vector<128x128xf32>
    tpu.vector_store %arg12[%c0_29, %c0_30], %32 {strides = array<i32>} : memref<128x128xf32, #tpu.memory_space<vmem>>, vector<128x128xf32>,
    return
  }
  func.func @transform_0(%arg0: i32) -> (i32, i32) {
    %c0_i32 = arith.constant 0 : i32
    %c0_i32_0 = arith.constant 0 : i32
    return %arg0, %c0_i32 : i32, i32
  }
  func.func @transform_1(%arg0: i32) -> (i32, i32) {
    %c0_i32 = arith.constant 0 : i32
    %c0_i32_0 = arith.constant 0 : i32
    return %arg0, %c0_i32 : i32, i32
  }
  func.func @transform_2(%arg0: i32) -> (i32, i32) {
    %c0_i32 = arith.constant 0 : i32
    %c0_i32_0 = arith.constant 0 : i32
    %c0_i32_1 = arith.constant 0 : i32
    return %c0_i32, %c0_i32_0 : i32, i32
  }
  func.func @transform_3(%arg0: i32) -> (i32, i32) {
    %c0_i32 = arith.constant 0 : i32
    %c0_i32_0 = arith.constant 0 : i32
    %c0_i32_1 = arith.constant 0 : i32
    return %c0_i32, %c0_i32_0 : i32, i32
  }
  func.func @transform_4(%arg0: i32) -> (i32, i32) {
    %c0_i32 = arith.constant 0 : i32
    %c0_i32_0 = arith.constant 0 : i32
    %c0_i32_1 = arith.constant 0 : i32
    return %c0_i32, %c0_i32_0 : i32, i32
  }
  func.func @transform_5(%arg0: i32) -> (i32, i32) {
    %c0_i32 = arith.constant 0 : i32
    %c0_i32_0 = arith.constant 0 : i32
    %c0_i32_1 = arith.constant 0 : i32
    return %c0_i32, %c0_i32_0 : i32, i32
  }
  func.func @transform_6(%arg0: i32) -> (i32, i32) {
    %c0_i32 = arith.constant 0 : i32
    %c0_i32_0 = arith.constant 0 : i32
    %c0_i32_1 = arith.constant 0 : i32
    return %c0_i32, %c0_i32_0 : i32, i32
  }
  func.func @transform_7(%arg0: i32) -> (i32, i32) {
    %c0_i32 = arith.constant 0 : i32
    %c0_i32_0 = arith.constant 0 : i32
    %c0_i32_1 = arith.constant 0 : i32
    return %c0_i32, %c0_i32_0 : i32, i32
  }
  func.func @transform_8(%arg0: i32) -> (i32, i32) {
    %c0_i32 = arith.constant 0 : i32
    %c0_i32_0 = arith.constant 0 : i32
    return %arg0, %c0_i32 : i32, i32
  }
  func.func @transform_9(%arg0: i32) -> (i32, i32) {
    %c0_i32 = arith.constant 0 : i32
    %c0_i32_0 = arith.constant 0 : i32
    return %arg0, %c0_i32 : i32, i32
  }
  func.func @transform_10(%arg0: i32) -> (i32, i32) {
    %c0_i32 = arith.constant 0 : i32
    %c0_i32_0 = arith.constant 0 : i32
    return %arg0, %c0_i32 : i32, i32
  }
  func.func @transform_11(%arg0: i32) -> (i32, i32) {
    %c0_i32 = arith.constant 0 : i32
    %c0_i32_0 = arith.constant 0 : i32
    return %arg0, %c0_i32 : i32, i32
  }
}

</mosaic_0001>

<llo_original>
// kernel: tpu_custom_call.1
$region0: #{tpu_custom_call.1}
  #allocation0 [shape = 'u32[]', space=smem, size = 0x4, offset = 0x4, fixed_abs, tag = 'smem constant byte address 0x4 - core index']
  #allocation1 [shape = 'u32[144,128]{1,0:T(1,128)}', space=vmem, size = 0x12000, scoped, tag = 'internal scratch']
  %s0 = inlined_call_operand.hbm [shape: bf16[256,256], index: 0, kind: input, shape index: {}]
  %s1 = inlined_call_operand.hbm [shape: f32[256,128], index: 1, kind: input, shape index: {}]
  %s2 = inlined_call_operand.hbm [shape: bf16[256,128], index: 2, kind: input, shape index: {}]
  %s3 = inlined_call_operand.vmem [shape: f32[1,128], index: 3, kind: input, shape index: {}]
  %s4 = inlined_call_operand.hbm [shape: f32[128,256], index: 4, kind: input, shape index: {}]
  %s5 = inlined_call_operand.vmem [shape: f32[1,256], index: 5, kind: input, shape index: {}]
  %s6 = inlined_call_operand.hbm [shape: bf16[128,256], index: 6, kind: input, shape index: {}]
  %s7 = inlined_call_operand.vmem [shape: f32[1,256], index: 7, kind: input, shape index: {}]
  %s8 = inlined_call_operand.hbm [shape: bf16[256,256], index: 8, kind: output, shape index: {0}]
  %s9 = inlined_call_operand.hbm [shape: f32[256,128], index: 9, kind: output, shape index: {1}]
  %s10 = inlined_call_operand.hbm [shape: f32[256,128], index: 10, kind: output, shape index: {2}]
  %s11 = inlined_call_operand.hbm [shape: f32[256,128], index: 11, kind: output, shape index: {3}]
  %12 = xla_tuple %s8, %s9, %s10, %s11
  %s13 = sld [smem:[#allocation0]]
  $region109: #{tpu_custom_call.1} parent=0
    _
  %s15 = ssub.s32 1, %s13
  %s16 = scalar_select 0, %s15, %s13
  $region1: #{tpu_custom_call.1} parent=0
    #allocation2 [shape = 'u8[131072]{0}', space=vmem, size = 0x20000, scoped, tag = 'input window, operand 0']
    #allocation3 [shape = 's32[2]{0}', space=sflag, size = 0x8, scoped, tag = 'scoped memory for tpu_custom_call.1']
    #allocation4 [shape = 's32[2]{0}', space=sflag, size = 0x8, scoped, tag = 'scoped memory for tpu_custom_call.1']
    #allocation5 [shape = 'u8[131072]{0}', space=vmem, size = 0x20000, scoped, tag = 'input window, operand 1']
    #allocation6 [shape = 's32[2]{0}', space=sflag, size = 0x8, scoped, tag = 'scoped memory for tpu_custom_call.1']
    #allocation7 [shape = 'u8[65536]{0}', space=vmem, size = 0x10000, scoped, tag = 'input window, operand 2, single buffered']
    #allocation8 [shape = 'u8[131072]{0}', space=vmem, size = 0x20000, scoped, tag = 'input window, operand 4, single buffered']
    #allocation9 [shape = 's32[1]{0}', space=sflag, size = 0x4, scoped, tag = 'scoped memory for tpu_custom_call.1']
    #allocation10 [shape = 'u8[65536]{0}', space=vmem, size = 0x10000, scoped, tag = 'input window, operand 6, single buffered']
    #allocation11 [shape = 'u8[131072]{0}', space=vmem, size = 0x20000, scoped, tag = 'output window, operand 0']
    #allocation12 [shape = 'u8[131072]{0}', space=vmem, size = 0x20000, scoped, tag = 'output window, operand 1']
    #allocation13 [shape = 's32[2]{0}', space=sflag, size = 0x8, scoped, tag = 'scoped memory for tpu_custom_call.1']
    #allocation14 [shape = 'u8[131072]{0}', space=vmem, size = 0x20000, scoped, tag = 'output window, operand 2']
    #allocation15 [shape = 'u8[131072]{0}', space=vmem, size = 0x20000, scoped, tag = 'output window, operand 3']
    #allocation16 [shape = 's32[2]{0}', space=sflag, size = 0x8, scoped, tag = 'scoped memory for tpu_custom_call.1']
    %17 = vsyncpa [#allocation3], 0
    %s18 = scalar_lea.sflag [#allocation3], 1
    %19 = vsyncpa %s18, 0
    %20 = vsyncpa [#allocation6], 0
    %s21 = scalar_lea.sflag [#allocation6], 1
    %22 = vsyncpa %s21, 0
    %23 = vsyncpa [#allocation9], 0
    %24 = vsyncpa [#allocation4], 0
    %s25 = scalar_lea.sflag [#allocation4], 1
    %26 = vsyncpa %s25, 0
    %27 = vsyncpa [#allocation13], 0
    %s28 = scalar_lea.sflag [#allocation13], 1
    %29 = vsyncpa %s28, 0
    %30 = vsyncpa [#allocation16], 0
    %s31 = scalar_lea.sflag [#allocation16], 1
    %32 = vsyncpa %s31, 0
    loop: start=0, step=1, limit=4
    $region2: #{tpu_custom_call.1} parent=1 // loop_pre_header
      _
    $region3: #{tpu_custom_call.1} parent=1 // loop_header
      %s34 = sphi 0, %s38
      %p35 = scmp.ge.s32.totalorder %s34, 4
      %s44 = sphi 0, %s46
      %s47 = sphi 0, %s44
      %s48 = sphi 0, %s47
      %s64 = sphi 0, %s48
      %s70 = sphi 0, %s72
      %s73 = sphi 0, %s70
      %s74 = sphi 0, %s73
      %s90 = sphi 0, %s74
      %s94 = sphi 0, %s94
      %s96 = sphi 0, %s94
      %s97 = sphi 0, %s96
      %s111 = sphi 0, %s97
      %s115 = sphi 0, %s115
      %s117 = sphi 0, %s115
      %s118 = sphi 0, %s117
      %s132 = sphi 0, %s118
      %s136 = sphi 0, %s136
      %s138 = sphi 0, %s136
      %s139 = sphi 0, %s138
      %s153 = sphi 0, %s139
      %s157 = sphi 0, %s157
      %s159 = sphi 0, %s157
      %s160 = sphi 0, %s159
      %s174 = sphi 0, %s160
      %s178 = sphi 0, %s178
      %s180 = sphi 0, %s178
      %s181 = sphi 0, %s180
      %s195 = sphi 0, %s181
      %s199 = sphi 0, %s199
      %s201 = sphi 0, %s199
      %s202 = sphi 0, %s201
      %s216 = sphi 0, %s202
      %s222 = sphi 0, %s224
      %s225 = sphi 0, %s222
      %s226 = sphi 0, %s225
      %s242 = sphi 0, %s226
      %s248 = sphi 0, %s250
      %s251 = sphi 0, %s248
      %s252 = sphi 0, %s251
      %s268 = sphi 0, %s252
      %s274 = sphi 0, %s276
      %s277 = sphi 0, %s274
      %s278 = sphi 0, %s277
      %s294 = sphi 0, %s278
      %s300 = sphi 0, %s302
      %s303 = sphi 0, %s300
      %s304 = sphi 0, %s303
      %s320 = sphi 0, %s304
    $region4: #{tpu_custom_call.1} parent=1 // loop_header_branch
      %37 = sbr.rel (%p35) target = $region8
    $region5: #{tpu_custom_call.1} parent=1 // loop_body
      %s39 = ssub.s32 %s34, 1
      %s40 = ssub.s32 %s34, 2
      %s41 = sadd.s32 %s34, 1
      %s42 = ssub.s32 %s34, %s41
      %p43 = scmp.eq.s32.totalorder %s42, 0
      %s45 = sadd.s32 %s44, 1
      %s46 = scalar_select %p43, %s44, %s45
      %p49 = pneg %p43
      %p50 = scmp.eq.s32.totalorder %s34, 1
      %p51 = por %p49, %p50
      %p52 = scmp.ne.s32.totalorder %s44, %s47
      %p53 = scmp.eq.s32.totalorder %s34, 0
      %p54 = por %p52, %p53
      %p55 = scmp.ne.s32.totalorder %s44, %s47
      %p56 = scmp.eq.s32.totalorder %s39, 1
      %p57 = por %p55, %p56
      %p58 = scmp.ne.s32.totalorder %s47, %s48
      %p59 = scmp.eq.s32.totalorder %s39, 0
      %p60 = por %p58, %p59
      %p61 = scmp.ne.s32.totalorder %s47, %s48
      %p62 = scmp.eq.s32.totalorder %s40, 1
      %p63 = por %p61, %p62
      %p65 = scmp.ne.s32.totalorder %s48, %s64
      %p66 = scmp.eq.s32.totalorder %s40, 0
      %p67 = por %p65, %p66
      %s68 = ssub.s32 %s34, %s41
      %p69 = scmp.eq.s32.totalorder %s68, 0
      %s71 = sadd.s32 %s70, 1
      %s72 = scalar_select %p69, %s70, %s71
      %p75 = pneg %p69
      %p76 = scmp.eq.s32.totalorder %s34, 1
      %p77 = por %p75, %p76
      %p78 = scmp.ne.s32.totalorder %s70, %s73
      %p79 = scmp.eq.s32.totalorder %s34, 0
      %p80 = por %p78, %p79
      %p81 = scmp.ne.s32.totalorder %s70, %s73
      %p82 = scmp.eq.s32.totalorder %s39, 1
      %p83 = por %p81, %p82
      %p84 = scmp.ne.s32.totalorder %s73, %s74
      %p85 = scmp.eq.s32.totalorder %s39, 0
      %p86 = por %p84, %p85
      %p87 = scmp.ne.s32.totalorder %s73, %s74
      %p88 = scmp.eq.s32.totalorder %s40, 1
      %p89 = por %p87, %p88
      %p91 = scmp.ne.s32.totalorder %s74, %s90
      %p92 = scmp.eq.s32.totalorder %s40, 0
      %p93 = por %p91, %p92
      %s95 = sadd.s32 %s94, 1
      %p98 = scmp.eq.s32.totalorder %s34, 1
      %p99 = scmp.ne.s32.totalorder %s94, %s96
      %p100 = scmp.eq.s32.totalorder %s34, 0
      %p101 = por %p99, %p100
      %p102 = scmp.ne.s32.totalorder %s94, %s96
      %p103 = scmp.eq.s32.totalorder %s39, 1
      %p104 = por %p102, %p103
      %p105 = scmp.ne.s32.totalorder %s96, %s97
      %p106 = scmp.eq.s32.totalorder %s39, 0
      %p107 = por %p105, %p106
      %p108 = scmp.ne.s32.totalorder %s96, %s97
      %p109 = scmp.eq.s32.totalorder %s40, 1
      %p110 = por %p108, %p109
      %p112 = scmp.ne.s32.totalorder %s97, %s111
      %p113 = scmp.eq.s32.totalorder %s40, 0
      %p114 = por %p112, %p113
      %s116 = sadd.s32 %s115, 1
      %p119 = scmp.eq.s32.totalorder %s34, 1
      %p120 = scmp.ne.s32.totalorder %s115, %s117
      %p121 = scmp.eq.s32.totalorder %s34, 0
      %p122 = por %p120, %p121
      %p123 = scmp.ne.s32.totalorder %s115, %s117
      %p124 = scmp.eq.s32.totalorder %s39, 1
      %p125 = por %p123, %p124
      %p126 = scmp.ne.s32.totalorder %s117, %s118
      %p127 = scmp.eq.s32.totalorder %s39, 0
      %p128 = por %p126, %p127
      %p129 = scmp.ne.s32.totalorder %s117, %s118
      %p130 = scmp.eq.s32.totalorder %s40, 1
      %p131 = por %p129, %p130
      %p133 = scmp.ne.s32.totalorder %s118, %s132
      %p134 = scmp.eq.s32.totalorder %s40, 0
      %p135 = por %p133, %p134
      %s137 = sadd.s32 %s136, 1
      %p140 = scmp.eq.s32.totalorder %s34, 1
      %p141 = scmp.ne.s32.totalorder %s136, %s138
      %p142 = scmp.eq.s32.totalorder %s34, 0
      %p143 = por %p141, %p142
      %p144 = scmp.ne.s32.totalorder %s136, %s138
      %p145 = scmp.eq.s32.totalorder %s39, 1
      %p146 = por %p144, %p145
      %p147 = scmp.ne.s32.totalorder %s138, %s139
      %p148 = scmp.eq.s32.totalorder %s39, 0
      %p149 = por %p147, %p148
      %p150 = scmp.ne.s32.totalorder %s138, %s139
      %p151 = scmp.eq.s32.totalorder %s40, 1
      %p152 = por %p150, %p151
      %p154 = scmp.ne.s32.totalorder %s139, %s153
      %p155 = scmp.eq.s32.totalorder %s40, 0
      %p156 = por %p154, %p155
      %s158 = sadd.s32 %s157, 1
      %p161 = scmp.eq.s32.totalorder %s34, 1
      %p162 = scmp.ne.s32.totalorder %s157, %s159
      %p163 = scmp.eq.s32.totalorder %s34, 0
      %p164 = por %p162, %p163
      %p165 = scmp.ne.s32.totalorder %s157, %s159
      %p166 = scmp.eq.s32.totalorder %s39, 1
      %p167 = por %p165, %p166
      %p168 = scmp.ne.s32.totalorder %s159, %s160
      %p169 = scmp.eq.s32.totalorder %s39, 0
      %p170 = por %p168, %p169
      %p171 = scmp.ne.s32.totalorder %s159, %s160
      %p172 = scmp.eq.s32.totalorder %s40, 1
      %p173 = por %p171, %p172
      %p175 = scmp.ne.s32.totalorder %s160, %s174
      %p176 = scmp.eq.s32.totalorder %s40, 0
      %p177 = por %p175, %p176
      %s179 = sadd.s32 %s178, 1
      %p182 = scmp.eq.s32.totalorder %s34, 1
      %p183 = scmp.ne.s32.totalorder %s178, %s180
      %p184 = scmp.eq.s32.totalorder %s34, 0
      %p185 = por %p183, %p184
      %p186 = scmp.ne.s32.totalorder %s178, %s180
      %p187 = scmp.eq.s32.totalorder %s39, 1
      %p188 = por %p186, %p187
      %p189 = scmp.ne.s32.totalorder %s180, %s181
      %p190 = scmp.eq.s32.totalorder %s39, 0
      %p191 = por %p189, %p190
      %p192 = scmp.ne.s32.totalorder %s180, %s181
      %p193 = scmp.eq.s32.totalorder %s40, 1
      %p194 = por %p192, %p193
      %p196 = scmp.ne.s32.totalorder %s181, %s195
      %p197 = scmp.eq.s32.totalorder %s40, 0
      %p198 = por %p196, %p197
      %s200 = sadd.s32 %s199, 1
      %p203 = scmp.eq.s32.totalorder %s34, 1
      %p204 = scmp.ne.s32.totalorder %s199, %s201
      %p205 = scmp.eq.s32.totalorder %s34, 0
      %p206 = por %p204, %p205
      %p207 = scmp.ne.s32.totalorder %s199, %s201
      %p208 = scmp.eq.s32.totalorder %s39, 1
      %p209 = por %p207, %p208
      %p210 = scmp.ne.s32.totalorder %s201, %s202
      %p211 = scmp.eq.s32.totalorder %s39, 0
      %p212 = por %p210, %p211
      %p213 = scmp.ne.s32.totalorder %s201, %s202
      %p214 = scmp.eq.s32.totalorder %s40, 1
      %p215 = por %p213, %p214
      %p217 = scmp.ne.s32.totalorder %s202, %s216
      %p218 = scmp.eq.s32.totalorder %s40, 0
      %p219 = por %p217, %p218
      %s220 = ssub.s32 %s34, %s41
      %p221 = scmp.eq.s32.totalorder %s220, 0
      %s223 = sadd.s32 %s222, 1
      %s224 = scalar_select %p221, %s222, %s223
      %p227 = pneg %p221
      %p228 = scmp.eq.s32.totalorder %s34, 1
      %p229 = por %p227, %p228
      %p230 = scmp.ne.s32.totalorder %s222, %s225
      %p231 = scmp.eq.s32.totalorder %s34, 0
      %p232 = por %p230, %p231
      %p233 = scmp.ne.s32.totalorder %s222, %s225
      %p234 = scmp.eq.s32.totalorder %s39, 1
      %p235 = por %p233, %p234
      %p236 = scmp.ne.s32.totalorder %s225, %s226
      %p237 = scmp.eq.s32.totalorder %s39, 0
      %p238 = por %p236, %p237
      %p239 = scmp.ne.s32.totalorder %s225, %s226
      %p240 = scmp.eq.s32.totalorder %s40, 1
      %p241 = por %p239, %p240
      %p243 = scmp.ne.s32.totalorder %s226, %s242
      %p244 = scmp.eq.s32.totalorder %s40, 0
      %p245 = por %p243, %p244
      %s246 = ssub.s32 %s34, %s41
      %p247 = scmp.eq.s32.totalorder %s246, 0
      %s249 = sadd.s32 %s248, 1
      %s250 = scalar_select %p247, %s248, %s249
      %p253 = pneg %p247
      %p254 = scmp.eq.s32.totalorder %s34, 1
      %p255 = por %p253, %p254
      %p256 = scmp.ne.s32.totalorder %s248, %s251
      %p257 = scmp.eq.s32.totalorder %s34, 0
      %p258 = por %p256, %p257
      %p259 = scmp.ne.s32.totalorder %s248, %s251
      %p260 = scmp.eq.s32.totalorder %s39, 1
      %p261 = por %p259, %p260
      %p262 = scmp.ne.s32.totalorder %s251, %s252
      %p263 = scmp.eq.s32.totalorder %s39, 0
      %p264 = por %p262, %p263
      %p265 = scmp.ne.s32.totalorder %s251, %s252
      %p266 = scmp.eq.s32.totalorder %s40, 1
      %p267 = por %p265, %p266
      %p269 = scmp.ne.s32.totalorder %s252, %s268
      %p270 = scmp.eq.s32.totalorder %s40, 0
      %p271 = por %p269, %p270
      %s272 = ssub.s32 %s34, %s41
      %p273 = scmp.eq.s32.totalorder %s272, 0
      %s275 = sadd.s32 %s274, 1
      %s276 = scalar_select %p273, %s274, %s275
      %p279 = pneg %p273
      %p280 = scmp.eq.s32.totalorder %s34, 1
      %p281 = por %p279, %p280
      %p282 = scmp.ne.s32.totalorder %s274, %s277
      %p283 = scmp.eq.s32.totalorder %s34, 0
      %p284 = por %p282, %p283
      %p285 = scmp.ne.s32.totalorder %s274, %s277
      %p286 = scmp.eq.s32.totalorder %s39, 1
      %p287 = por %p285, %p286
      %p288 = scmp.ne.s32.totalorder %s277, %s278
      %p289 = scmp.eq.s32.totalorder %s39, 0
      %p290 = por %p288, %p289
      %p291 = scmp.ne.s32.totalorder %s277, %s278
      %p292 = scmp.eq.s32.totalorder %s40, 1
      %p293 = por %p291, %p292
      %p295 = scmp.ne.s32.totalorder %s278, %s294
      %p296 = scmp.eq.s32.totalorder %s40, 0
      %p297 = por %p295, %p296
      %s298 = ssub.s32 %s34, %s41
      %p299 = scmp.eq.s32.totalorder %s298, 0
      %s301 = sadd.s32 %s300, 1
      %s302 = scalar_select %p299, %s300, %s301
      %p305 = pneg %p299
      %p306 = scmp.eq.s32.totalorder %s34, 1
      %p307 = por %p305, %p306
      %p308 = scmp.ne.s32.totalorder %s300, %s303
      %p309 = scmp.eq.s32.totalorder %s34, 0
      %p310 = por %p308, %p309
      %p311 = scmp.ne.s32.totalorder %s300, %s303
      %p312 = scmp.eq.s32.totalorder %s39, 1
      %p313 = por %p311, %p312
      %p314 = scmp.ne.s32.totalorder %s303, %s304
      %p315 = scmp.eq.s32.totalorder %s39, 0
      %p316 = por %p314, %p315
      %p317 = scmp.ne.s32.totalorder %s303, %s304
      %p318 = scmp.eq.s32.totalorder %s40, 1
      %p319 = por %p317, %p318
      %p321 = scmp.ne.s32.totalorder %s304, %s320
      %p322 = scmp.eq.s32.totalorder %s40, 0
      %p323 = por %p321, %p322
      %p324 = scmp.le.s32.totalorder 1, %s34
      %p325 = scmp.lt.s32.totalorder %s34, 3
      %p326 = pnand %p324, %p325
      %p327 = pneg %p326
      // Predicated region
      $region9: #{tpu_custom_call.1} parent=5 // pred_check
        _
      $region10: #{tpu_custom_call.1} parent=5 // pred_check_branch
        %329 = sbr.rel (%p326) target = $region12
      $region11: #{tpu_custom_call.1} parent=5 // pred_region
        %s330 = ssub.s32 %s34, 1
        // Predicated region
        $region13: #{tpu_custom_call.1} parent=11 // pred_check
          %p331 = pneg %p107
        $region14: #{tpu_custom_call.1} parent=11 // pred_check_branch
          %333 = sbr.rel (%p331) target = $region16
        $region15: #{tpu_custom_call.1} parent=11 // pred_region
          %s335 = ssub.s32 2048, 2048
          %336 = vsyncadd [#allocation6], %s335
          %s337 = sshll.u32 [#allocation7], 4
          %s338 = int_to_ptr.vmem [resolvable:$true] %s337
          %343 = dma.hbm_to_vmem [thread:$0]  %s2, 2048, %s338, [#allocation6], 64, 64, 4
        $region16: #{tpu_custom_call.1} parent=11 // pred_fallthru
          _
        // Predicated region
        $region17: #{tpu_custom_call.1} parent=11 // pred_check
          %p344 = pneg %p128
        $region18: #{tpu_custom_call.1} parent=11 // pred_check_branch
          %346 = sbr.rel (%p344) target = $region20
        $region19: #{tpu_custom_call.1} parent=11 // pred_region
          _
        $region20: #{tpu_custom_call.1} parent=11 // pred_fallthru
          _
        // Predicated region
        $region21: #{tpu_custom_call.1} parent=11 // pred_check
          %p347 = pneg %p149
        $region22: #{tpu_custom_call.1} parent=11 // pred_check_branch
          %349 = sbr.rel (%p347) target = $region24
        $region23: #{tpu_custom_call.1} parent=11 // pred_region
          %s351 = ssub.s32 4096, 4096
          %352 = vsyncadd [#allocation9], %s351
          %s353 = sshll.u32 [#allocation8], 4
          %s354 = int_to_ptr.vmem [resolvable:$true] %s353
          %359 = dma.hbm_to_vmem [thread:$0]  %s4, 4096, %s354, [#allocation9], 256, 256, 16
        $region24: #{tpu_custom_call.1} parent=11 // pred_fallthru
          _
        // Predicated region
        $region25: #{tpu_custom_call.1} parent=11 // pred_check
          %p360 = pneg %p170
        $region26: #{tpu_custom_call.1} parent=11 // pred_check_branch
          %362 = sbr.rel (%p360) target = $region28
        $region27: #{tpu_custom_call.1} parent=11 // pred_region
          _
        $region28: #{tpu_custom_call.1} parent=11 // pred_fallthru
          _
        // Predicated region
        $region29: #{tpu_custom_call.1} parent=11 // pred_check
          %p363 = pneg %p191
        $region30: #{tpu_custom_call.1} parent=11 // pred_check_branch
          %365 = sbr.rel (%p363) target = $region32
        $region31: #{tpu_custom_call.1} parent=11 // pred_region
          %s367 = ssub.s32 2048, 2048
          %368 = vsyncadd [#allocation9], %s367
          %s369 = sshll.u32 [#allocation10], 4
          %s370 = int_to_ptr.vmem [resolvable:$true] %s369
          %375 = dma.hbm_to_vmem [thread:$0]  %s6, 2048, %s370, [#allocation9], 128, 128, 8
        $region32: #{tpu_custom_call.1} parent=11 // pred_fallthru
          _
        // Predicated region
        $region33: #{tpu_custom_call.1} parent=11 // pred_check
          %p376 = pneg %p212
        $region34: #{tpu_custom_call.1} parent=11 // pred_check_branch
          %378 = sbr.rel (%p376) target = $region36
        $region35: #{tpu_custom_call.1} parent=11 // pred_region
          _
        $region36: #{tpu_custom_call.1} parent=11 // pred_fallthru
          _
      $region12: #{tpu_custom_call.1} parent=5 // pred_fallthru
        _
      %p379 = scmp.lt.s32.totalorder %s34, 2
      // Predicated region
      $region37: #{tpu_custom_call.1} parent=5 // pred_check
        %p380 = pneg %p379
      $region38: #{tpu_custom_call.1} parent=5 // pred_check_branch
        %382 = sbr.rel (%p380) target = $region40
      $region39: #{tpu_custom_call.1} parent=5 // pred_region
        // Predicated region
        $region41: #{tpu_custom_call.1} parent=39 // pred_check
          %p383 = pneg %p54
        $region42: #{tpu_custom_call.1} parent=39 // pred_check_branch
          %385 = sbr.rel (%p383) target = $region44
        $region43: #{tpu_custom_call.1} parent=39 // pred_region
          %s386 = sand.u32 %s44, 1
          %s387 = scalar_lea.sflag [#allocation3], %s386
          %s388 = sand.u32 %s44, 1
          %s389 = smul.addr %s388, 128
          %s390 = scalar_lea.vmem [#allocation2], %s389
          %s391 = smul.u32 16, %s34
          %s393 = ssub.s32 2048, 2048
          %394 = vsyncadd %s387, %s393
          %s395 = smul.addr %s391, 2
          %s396 = smul.addr %s395, 64
          %s397 = scalar_lea.hbm %s0, %s396
          %s398 = sshll.u32 %s390, 4
          %s399 = int_to_ptr.vmem [resolvable:$true] %s398
          %404 = dma.hbm_to_vmem [thread:$0]  %s397, 2048, %s399, %s387, 128, 128, 8
        $region44: #{tpu_custom_call.1} parent=39 // pred_fallthru
          _
        // Predicated region
        $region45: #{tpu_custom_call.1} parent=39 // pred_check
          %p405 = pneg %p80
        $region46: #{tpu_custom_call.1} parent=39 // pred_check_branch
          %407 = sbr.rel (%p405) target = $region48
        $region47: #{tpu_custom_call.1} parent=39 // pred_region
          %s408 = sand.u32 %s34, 1
          %s409 = scalar_lea.sflag [#allocation6], %s408
          %s410 = sand.u32 %s70, 1
          %s411 = smul.addr %s410, 128
          %s412 = scalar_lea.vmem [#allocation5], %s411
          %s413 = smul.u32 16, %s34
          %s415 = ssub.s32 2048, 2048
          %416 = vsyncadd %s409, %s415
          %s417 = smul.addr %s413, 128
          %s418 = scalar_lea.hbm %s1, %s417
          %s419 = sshll.u32 %s412, 4
          %s420 = int_to_ptr.vmem [resolvable:$true] %s419
          %425 = dma.hbm_to_vmem [thread:$0]  %s418, 2048, %s420, %s409, 128, 128, 8
        $region48: #{tpu_custom_call.1} parent=39 // pred_fallthru
          _
      $region40: #{tpu_custom_call.1} parent=5 // pred_fallthru
        _
      %p426 = scmp.le.s32.totalorder 1, %s34
      %p427 = scmp.lt.s32.totalorder %s34, 3
      %p428 = pnand %p426, %p427
      %p429 = pneg %p428
      // Predicated region
      $region49: #{tpu_custom_call.1} parent=5 // pred_check
        _
      $region50: #{tpu_custom_call.1} parent=5 // pred_check_branch
        %431 = sbr.rel (%p428) target = $region52
      $region51: #{tpu_custom_call.1} parent=5 // pred_region
        %s432 = ssub.s32 %s34, 1
        %s433 = sand.u32 %s47, 1
        %s434 = scalar_lea.sflag [#allocation3], %s433
        %s435 = sand.u32 %s47, 1
        %s436 = smul.addr %s435, 128
        %s437 = scalar_lea.vmem [#allocation2], %s436
        // Predicated region
        $region53: #{tpu_custom_call.1} parent=51 // pred_check
          %p438 = pneg %p60
        $region54: #{tpu_custom_call.1} parent=51 // pred_check_branch
          %440 = sbr.rel (%p438) target = $region56
        $region55: #{tpu_custom_call.1} parent=51 // pred_region
          %441 = dma.done %s434, 2048
        $region56: #{tpu_custom_call.1} parent=51 // pred_fallthru
          _
        %s442 = sand.u32 %s39, 1
        %s443 = scalar_lea.sflag [#allocation6], %s442
        %s444 = sand.u32 %s73, 1
        %s445 = smul.addr %s444, 128
        %s446 = scalar_lea.vmem [#allocation5], %s445
        // Predicated region
        $region57: #{tpu_custom_call.1} parent=51 // pred_check
          %p447 = pneg %p86
        $region58: #{tpu_custom_call.1} parent=51 // pred_check_branch
          %449 = sbr.rel (%p447) target = $region60
        $region59: #{tpu_custom_call.1} parent=51 // pred_region
          %450 = dma.done %s443, 2048
        $region60: #{tpu_custom_call.1} parent=51 // pred_fallthru
          _
        // Predicated region
        $region61: #{tpu_custom_call.1} parent=51 // pred_check
          %p451 = pneg %p107
        $region62: #{tpu_custom_call.1} parent=51 // pred_check_branch
          %453 = sbr.rel (%p451) target = $region64
        $region63: #{tpu_custom_call.1} parent=51 // pred_region
          %454 = dma.done [#allocation6], 2048
        $region64: #{tpu_custom_call.1} parent=51 // pred_fallthru
          _
        // Predicated region
        $region65: #{tpu_custom_call.1} parent=51 // pred_check
          %p455 = pneg %p149
        $region66: #{tpu_custom_call.1} parent=51 // pred_check_branch
          %457 = sbr.rel (%p455) target = $region68
        $region67: #{tpu_custom_call.1} parent=51 // pred_region
          %458 = dma.done [#allocation9], 4096
        $region68: #{tpu_custom_call.1} parent=51 // pred_fallthru
          _
        // Predicated region
        $region69: #{tpu_custom_call.1} parent=51 // pred_check
          %p459 = pneg %p191
        $region70: #{tpu_custom_call.1} parent=51 // pred_check_branch
          %461 = sbr.rel (%p459) target = $region72
        $region71: #{tpu_custom_call.1} parent=51 // pred_region
          %462 = dma.done [#allocation9], 2048
        $region72: #{tpu_custom_call.1} parent=51 // pred_fallthru
          _
        %s463 = sand.u32 %s47, 1
        %s464 = scalar_lea.sflag [#allocation3], %s463
        %s465 = sand.u32 %s47, 1
        %s466 = smul.addr %s465, 128
        %s467 = scalar_lea.vmem [#allocation2], %s466
        %p468 = pneg %p60
        %p469 = pneg %p57
        %s470 = sand.u32 %s39, 1
        %s471 = scalar_lea.sflag [#allocation6], %s470
        %s472 = sand.u32 %s73, 1
        %s473 = smul.addr %s472, 128
        %s474 = scalar_lea.vmem [#allocation5], %s473
        %p475 = pneg %p86
        %p476 = pneg %p83
        %p477 = pneg %p107
        %p478 = pneg %p104
        %p479 = pneg %p128
        %p480 = pneg %p125
        %p481 = pneg %p149
        %p482 = pneg %p146
        %p483 = pneg %p170
        %p484 = pneg %p167
        %p485 = pneg %p191
        %p486 = pneg %p188
        %p487 = pneg %p212
        %p488 = pneg %p209
        %p489 = pneg %p238
        %p490 = pneg %p235
        %s491 = sand.u32 %s225, 1
        %s492 = scalar_lea.sflag [#allocation4], %s491
        %s493 = sand.u32 %s225, 1
        %s494 = smul.addr %s493, 128
        %s495 = scalar_lea.vmem [#allocation11], %s494
        %p496 = pneg %p264
        %p497 = pneg %p261
        %s498 = sand.u32 %s39, 1
        %s499 = scalar_lea.sflag [#allocation13], %s498
        %s500 = sand.u32 %s251, 1
        %s501 = smul.addr %s500, 128
        %s502 = scalar_lea.vmem [#allocation12], %s501
        %p503 = pneg %p290
        %p504 = pneg %p287
        %s505 = sand.u32 %s39, 1
        %s506 = scalar_lea.sflag [#allocation13], %s505
        %s507 = sand.u32 %s277, 1
        %s508 = smul.addr %s507, 128
        %s509 = scalar_lea.vmem [#allocation14], %s508
        %p510 = pneg %p316
        %p511 = pneg %p313
        %s512 = sand.u32 %s303, 1
        %s513 = scalar_lea.sflag [#allocation16], %s512
        %s514 = sand.u32 %s303, 1
        %s515 = smul.addr %s514, 128
        %s516 = scalar_lea.vmem [#allocation15], %s515
        %s517 = smul.u32 16, %s39
        %s518 = smul.u32 16, %s39
        %s519 = smul.u32 16, %s39
        %s520 = smul.u32 16, %s39
        %s521 = smul.u32 16, %s39
        %s522 = smul.u32 16, %s39
        %v524 = vld [vmem:[%s437] sm:$0xff]
        %v525 = vld [vmem:[%s437 + $0x8] sm:$0xff]
        %v526 = vld [vmem:[%s437 + $0x10] sm:$0xff]
        %v527 = vld [vmem:[%s437 + $0x18] sm:$0xff]
        %v528 = vld [vmem:[%s437 + $0x20] sm:$0xff]
        %v529 = vld [vmem:[%s437 + $0x28] sm:$0xff]
        %v530 = vld [vmem:[%s437 + $0x30] sm:$0xff]
        %v531 = vld [vmem:[%s437 + $0x38] sm:$0xff]
        %v532 = vld [vmem:[%s437 + $0x40] sm:$0xff]
        %v533 = vld [vmem:[%s437 + $0x48] sm:$0xff]
        %v534 = vld [vmem:[%s437 + $0x50] sm:$0xff]
        %v535 = vld [vmem:[%s437 + $0x58] sm:$0xff]
        %v536 = vld [vmem:[%s437 + $0x60] sm:$0xff]
        %v537 = vld [vmem:[%s437 + $0x68] sm:$0xff]
        %v538 = vld [vmem:[%s437 + $0x70] sm:$0xff]
        %v539 = vld [vmem:[%s437 + $0x78] sm:$0xff]
        %v540 = vld [vmem:[#allocation7] sm:$0xf]
        %v541 = vld [vmem:[#allocation7 + $0x4] sm:$0xf]
        %v542 = vld [vmem:[#allocation7 + $0x8] sm:$0xf]
        %v543 = vld [vmem:[#allocation7 + $0xc] sm:$0xf]
        %v544 = vld [vmem:[#allocation7 + $0x10] sm:$0xf]
        %v545 = vld [vmem:[#allocation7 + $0x14] sm:$0xf]
        %v546 = vld [vmem:[#allocation7 + $0x18] sm:$0xf]
        %v547 = vld [vmem:[#allocation7 + $0x1c] sm:$0xf]
        %v548 = vld [vmem:[#allocation7 + $0x20] sm:$0xf]
        %v549 = vld [vmem:[#allocation7 + $0x24] sm:$0xf]
        %v550 = vld [vmem:[#allocation7 + $0x28] sm:$0xf]
        %v551 = vld [vmem:[#allocation7 + $0x2c] sm:$0xf]
        %v552 = vld [vmem:[#allocation7 + $0x30] sm:$0xf]
        %v553 = vld [vmem:[#allocation7 + $0x34] sm:$0xf]
        %v554 = vld [vmem:[#allocation7 + $0x38] sm:$0xf]
        %v555 = vld [vmem:[#allocation7 + $0x3c] sm:$0xf]
        %v556 = vld [vmem:[#allocation7 + $0x40] sm:$0xf]
        %v557 = vld [vmem:[#allocation7 + $0x44] sm:$0xf]
        %v558 = vld [vmem:[#allocation7 + $0x48] sm:$0xf]
        %v559 = vld [vmem:[#allocation7 + $0x4c] sm:$0xf]
        %v560 = vld [vmem:[#allocation7 + $0x50] sm:$0xf]
        %v561 = vld [vmem:[#allocation7 + $0x54] sm:$0xf]
        %v562 = vld [vmem:[#allocation7 + $0x58] sm:$0xf]
        %v563 = vld [vmem:[#allocation7 + $0x5c] sm:$0xf]
        %v564 = vld [vmem:[#allocation7 + $0x60] sm:$0xf]
        %v565 = vld [vmem:[#allocation7 + $0x64] sm:$0xf]
        %v566 = vld [vmem:[#allocation7 + $0x68] sm:$0xf]
        %v567 = vld [vmem:[#allocation7 + $0x6c] sm:$0xf]
        %v568 = vld [vmem:[#allocation7 + $0x70] sm:$0xf]
        %v569 = vld [vmem:[#allocation7 + $0x74] sm:$0xf]
        %v570 = vld [vmem:[#allocation7 + $0x78] sm:$0xf]
        %v571 = vld [vmem:[#allocation7 + $0x7c] sm:$0xf]
        %v572 = vld [vmem:[%s3] sm:$0x1]
        %v574 = vlaneseq
        %v575 = vshrl.u32 %v574, 7
        %v576 = vsub.s32 0, %v575
        %v577 = vrot.slane %v572, %v576
        %v595 = vunpack.c.l.b16 %v524
        %v596 = vunpack.c.h.b16 %v524
        %v597 = vunpack.c.l.b16 %v525
        %v598 = vunpack.c.h.b16 %v525
        %v599 = vunpack.c.l.b16 %v526
        %v600 = vunpack.c.h.b16 %v526
        %v601 = vunpack.c.l.b16 %v527
        %v602 = vunpack.c.h.b16 %v527
        %v603 = vunpack.c.l.b16 %v528
        %v604 = vunpack.c.h.b16 %v528
        %v605 = vunpack.c.l.b16 %v529
        %v606 = vunpack.c.h.b16 %v529
        %v607 = vunpack.c.l.b16 %v530
        %v608 = vunpack.c.h.b16 %v530
        %v609 = vunpack.c.l.b16 %v531
        %v610 = vunpack.c.h.b16 %v531
        %v611 = vunpack.c.l.b16 %v532
        %v612 = vunpack.c.h.b16 %v532
        %v613 = vunpack.c.l.b16 %v533
        %v614 = vunpack.c.h.b16 %v533
        %v615 = vunpack.c.l.b16 %v534
        %v616 = vunpack.c.h.b16 %v534
        %v617 = vunpack.c.l.b16 %v535
        %v618 = vunpack.c.h.b16 %v535
        %v619 = vunpack.c.l.b16 %v536
        %v620 = vunpack.c.h.b16 %v536
        %v621 = vunpack.c.l.b16 %v537
        %v622 = vunpack.c.h.b16 %v537
        %v623 = vunpack.c.l.b16 %v538
        %v624 = vunpack.c.h.b16 %v538
        %v625 = vunpack.c.l.b16 %v539
        %v626 = vunpack.c.h.b16 %v539
        %v627 = vpack.c.b16 %v597, %v595
        %v628 = vpack.c.b16 %v598, %v596
        %v629 = vpack.c.b16 %v601, %v599
        %v630 = vpack.c.b16 %v602, %v600
        %v631 = vpack.c.b16 %v605, %v603
        %v632 = vpack.c.b16 %v606, %v604
        %v633 = vpack.c.b16 %v609, %v607
        %v634 = vpack.c.b16 %v610, %v608
        %v635 = vpack.c.b16 %v613, %v611
        %v636 = vpack.c.b16 %v614, %v612
        %v637 = vpack.c.b16 %v617, %v615
        %v638 = vpack.c.b16 %v618, %v616
        %v639 = vpack.c.b16 %v621, %v619
        %v640 = vpack.c.b16 %v622, %v620
        %v641 = vpack.c.b16 %v625, %v623
        %v642 = vpack.c.b16 %v626, %v624
        %v691 = vunpack.c.l.b16 %v540
        %v692 = vunpack.c.l.b16 %v541
        %v693 = vunpack.c.l.b16 %v542
        %v694 = vunpack.c.l.b16 %v543
        %v695 = vunpack.c.l.b16 %v544
        %v696 = vunpack.c.l.b16 %v545
        %v697 = vunpack.c.l.b16 %v546
        %v698 = vunpack.c.l.b16 %v547
        %v699 = vunpack.c.l.b16 %v548
        %v700 = vunpack.c.l.b16 %v549
        %v701 = vunpack.c.l.b16 %v550
        %v702 = vunpack.c.l.b16 %v551
        %v703 = vunpack.c.l.b16 %v552
        %v704 = vunpack.c.l.b16 %v553
        %v705 = vunpack.c.l.b16 %v554
        %v706 = vunpack.c.l.b16 %v555
        %v707 = vunpack.c.l.b16 %v556
        %v708 = vunpack.c.l.b16 %v557
        %v709 = vunpack.c.l.b16 %v558
        %v710 = vunpack.c.l.b16 %v559
        %v711 = vunpack.c.l.b16 %v560
        %v712 = vunpack.c.l.b16 %v561
        %v713 = vunpack.c.l.b16 %v562
        %v714 = vunpack.c.l.b16 %v563
        %v715 = vunpack.c.l.b16 %v564
        %v716 = vunpack.c.l.b16 %v565
        %v717 = vunpack.c.l.b16 %v566
        %v718 = vunpack.c.l.b16 %v567
        %v719 = vunpack.c.l.b16 %v568
        %v720 = vunpack.c.l.b16 %v569
        %v721 = vunpack.c.l.b16 %v570
        %v722 = vunpack.c.l.b16 %v571
        %v723 = vpack.c.b16 %v692, %v691
        %v724 = vpack.c.b16 %v694, %v693
        %v725 = vpack.c.b16 %v696, %v695
        %v726 = vpack.c.b16 %v698, %v697
        %v727 = vpack.c.b16 %v700, %v699
        %v728 = vpack.c.b16 %v702, %v701
        %v729 = vpack.c.b16 %v704, %v703
        %v730 = vpack.c.b16 %v706, %v705
        %v731 = vpack.c.b16 %v708, %v707
        %v732 = vpack.c.b16 %v710, %v709
        %v733 = vpack.c.b16 %v712, %v711
        %v734 = vpack.c.b16 %v714, %v713
        %v735 = vpack.c.b16 %v716, %v715
        %v736 = vpack.c.b16 %v718, %v717
        %v737 = vpack.c.b16 %v720, %v719
        %v738 = vpack.c.b16 %v722, %v721
        %755 = vmatprep.subr.bf16.mxu0 0
        %756 = vmatpush1.bf16.msra.mxu0 %v723
        %757 = vmatprep.subr.bf16.mxu0 0
        %758 = vmatpush1.bf16.msra.mxu0 %v724
        %759 = vmatprep.subr.bf16.mxu0 0
        %760 = vmatpush1.bf16.msra.mxu0 %v725
        %761 = vmatprep.subr.bf16.mxu0 0
        %762 = vmatpush1.bf16.msra.mxu0 %v726
        %763 = vmatprep.subr.bf16.mxu0 0
        %764 = vmatpush1.bf16.msra.mxu0 %v727
        %765 = vmatprep.subr.bf16.mxu0 0
        %766 = vmatpush1.bf16.msra.mxu0 %v728
        %767 = vmatprep.subr.bf16.mxu0 0
        %768 = vmatpush1.bf16.msra.mxu0 %v729
        %769 = vmatprep.subr.bf16.mxu0 0
        %770 = vmatpush1.bf16.msra.mxu0 %v730
        %771 = vmatprep.subr.bf16.mxu0 0
        %772 = vmatpush1.bf16.msra.mxu0 %v731
        %773 = vmatprep.subr.bf16.mxu0 0
        %774 = vmatpush1.bf16.msra.mxu0 %v732
        %775 = vmatprep.subr.bf16.mxu0 0
        %776 = vmatpush1.bf16.msra.mxu0 %v733
        %777 = vmatprep.subr.bf16.mxu0 0
        %778 = vmatpush1.bf16.msra.mxu0 %v734
        %779 = vmatprep.subr.bf16.mxu0 0
        %780 = vmatpush1.bf16.msra.mxu0 %v735
        %781 = vmatprep.subr.bf16.mxu0 0
        %782 = vmatpush1.bf16.msra.mxu0 %v736
        %783 = vmatprep.subr.bf16.mxu0 0
        %784 = vmatpush1.bf16.msra.mxu0 %v737
        %785 = vmatprep.subr.bf16.mxu0 0
        %786 = vmatpush1.bf16.msra.mxu0 %v738
        %787 = vmatprep.mubr.bf16.mxu0 %v628
        %788 = vmatmul.mubr.bf16.gmra.mrb[0].mxu0 %v627
        %v789 = vpop.f32.mrb[0].mxu0
        %v790 = vadd.f32 %v577, %v789
        %v791 = vpop.f32.mrb[0].mxu0
        %v792 = vpop.f32.mrb[0].mxu0
        %v793 = vadd.f32 %v577, %v792
        %v794 = vpop.f32.mrb[0].mxu0
        %795 = vmatprep.mubr.bf16.mxu0 %v630
        %796 = vmatmul.mubr.bf16.gmra.mrb[0].mxu0 %v629
        %v797 = vpop.f32.mrb[0].mxu0
        %v798 = vadd.f32 %v577, %v797
        %v799 = vpop.f32.mrb[0].mxu0
        %v800 = vpop.f32.mrb[0].mxu0
        %v801 = vadd.f32 %v577, %v800
        %v802 = vpop.f32.mrb[0].mxu0
        %803 = vmatprep.mubr.bf16.mxu0 %v632
        %804 = vmatmul.mubr.bf16.gmra.mrb[0].mxu0 %v631
        %v805 = vpop.f32.mrb[0].mxu0
        %v806 = vadd.f32 %v577, %v805
        %v807 = vpop.f32.mrb[0].mxu0
        %v808 = vpop.f32.mrb[0].mxu0
        %v809 = vadd.f32 %v577, %v808
        %v810 = vpop.f32.mrb[0].mxu0
        %811 = vmatprep.mubr.bf16.mxu0 %v634
        %812 = vmatmul.mubr.bf16.gmra.mrb[0].mxu0 %v633
        %v813 = vpop.f32.mrb[0].mxu0
        %v814 = vadd.f32 %v577, %v813
        %v815 = vpop.f32.mrb[0].mxu0
        %v816 = vpop.f32.mrb[0].mxu0
        %v817 = vadd.f32 %v577, %v816
        %v818 = vpop.f32.mrb[0].mxu0
        %819 = vmatprep.mubr.bf16.mxu0 %v636
        %820 = vmatmul.mubr.bf16.gmra.mrb[0].mxu0 %v635
        %v821 = vpop.f32.mrb[0].mxu0
        %v822 = vadd.f32 %v577, %v821
        %v823 = vpop.f32.mrb[0].mxu0
        %v824 = vpop.f32.mrb[0].mxu0
        %v825 = vadd.f32 %v577, %v824
        %v826 = vpop.f32.mrb[0].mxu0
        %827 = vmatprep.mubr.bf16.mxu0 %v638
        %828 = vmatmul.mubr.bf16.gmra.mrb[0].mxu0 %v637
        %v829 = vpop.f32.mrb[0].mxu0
        %v830 = vadd.f32 %v577, %v829
        %v831 = vpop.f32.mrb[0].mxu0
        %v832 = vpop.f32.mrb[0].mxu0
        %v833 = vadd.f32 %v577, %v832
        %v834 = vpop.f32.mrb[0].mxu0
        %835 = vmatprep.mubr.bf16.mxu0 %v640
        %836 = vmatmul.mubr.bf16.gmra.mrb[0].mxu0 %v639
        %v837 = vpop.f32.mrb[0].mxu0
        %v838 = vadd.f32 %v577, %v837
        %v839 = vpop.f32.mrb[0].mxu0
        %v840 = vpop.f32.mrb[0].mxu0
        %v841 = vadd.f32 %v577, %v840
        %v842 = vpop.f32.mrb[0].mxu0
        %843 = vmatprep.mubr.bf16.mxu0 %v642
        %844 = vmatmul.mubr.bf16.gmra.mrb[0].mxu0 %v641
        %v845 = vpop.f32.mrb[0].mxu0
        %v846 = vadd.f32 %v577, %v845
        %v847 = vpop.f32.mrb[0].mxu0
        %v848 = vpop.f32.mrb[0].mxu0
        %v849 = vadd.f32 %v577, %v848
        %v850 = vpop.f32.mrb[0].mxu0
        %851 = vdwg.mxu0
        %v852 = vmax.f32 %v790, 0.0
        %v853 = vmax.f32 %v793, 0.0
        %v854 = vmax.f32 %v798, 0.0
        %v855 = vmax.f32 %v801, 0.0
        %v856 = vmax.f32 %v806, 0.0
        %v857 = vmax.f32 %v809, 0.0
        %v858 = vmax.f32 %v814, 0.0
        %v859 = vmax.f32 %v817, 0.0
        %v860 = vmax.f32 %v822, 0.0
        %v861 = vmax.f32 %v825, 0.0
        %v862 = vmax.f32 %v830, 0.0
        %v863 = vmax.f32 %v833, 0.0
        %v864 = vmax.f32 %v838, 0.0
        %v865 = vmax.f32 %v841, 0.0
        %v866 = vmax.f32 %v846, 0.0
        %v867 = vmax.f32 %v849, 0.0
        %v868 = vld [vmem:[#allocation8] sm:$0xff]
        %v869 = vld [vmem:[#allocation8 + $0x8] sm:$0xff]
        %v870 = vld [vmem:[#allocation8 + $0x10] sm:$0xff]
        %v871 = vld [vmem:[#allocation8 + $0x18] sm:$0xff]
        %v872 = vld [vmem:[#allocation8 + $0x20] sm:$0xff]
        %v873 = vld [vmem:[#allocation8 + $0x28] sm:$0xff]
        %v874 = vld [vmem:[#allocation8 + $0x30] sm:$0xff]
        %v875 = vld [vmem:[#allocation8 + $0x38] sm:$0xff]
        %v876 = vld [vmem:[#allocation8 + $0x40] sm:$0xff]
        %v877 = vld [vmem:[#allocation8 + $0x48] sm:$0xff]
        %v878 = vld [vmem:[#allocation8 + $0x50] sm:$0xff]
        %v879 = vld [vmem:[#allocation8 + $0x58] sm:$0xff]
        %v880 = vld [vmem:[#allocation8 + $0x60] sm:$0xff]
        %v881 = vld [vmem:[#allocation8 + $0x68] sm:$0xff]
        %v882 = vld [vmem:[#allocation8 + $0x70] sm:$0xff]
        %v883 = vld [vmem:[#allocation8 + $0x78] sm:$0xff]
        %v884 = vld [vmem:[#allocation8 + $0x80] sm:$0xff]
        %v885 = vld [vmem:[#allocation8 + $0x88] sm:$0xff]
        %v886 = vld [vmem:[#allocation8 + $0x90] sm:$0xff]
        %v887 = vld [vmem:[#allocation8 + $0x98] sm:$0xff]
        %v888 = vld [vmem:[#allocation8 + $0xa0] sm:$0xff]
        %v889 = vld [vmem:[#allocation8 + $0xa8] sm:$0xff]
        %v890 = vld [vmem:[#allocation8 + $0xb0] sm:$0xff]
        %v891 = vld [vmem:[#allocation8 + $0xb8] sm:$0xff]
        %v892 = vld [vmem:[#allocation8 + $0xc0] sm:$0xff]
        %v893 = vld [vmem:[#allocation8 + $0xc8] sm:$0xff]
        %v894 = vld [vmem:[#allocation8 + $0xd0] sm:$0xff]
        %v895 = vld [vmem:[#allocation8 + $0xd8] sm:$0xff]
        %v896 = vld [vmem:[#allocation8 + $0xe0] sm:$0xff]
        %v897 = vld [vmem:[#allocation8 + $0xe8] sm:$0xff]
        %v898 = vld [vmem:[#allocation8 + $0xf0] sm:$0xff]
        %v899 = vld [vmem:[#allocation8 + $0xf8] sm:$0xff]
        %v900 = vld [vmem:[%s5] sm:$0x3]
        %v902 = vlaneseq
        %v903 = vshrl.u32 %v902, 7
        %v904 = vsub.s32 0, %v903
        %v905 = vrot.slane %v900, %v904
        %v906 = vlaneseq
        %v907 = vshrl.u32 %v906, 7
        %v908 = vsub.s32 1, %v907
        %v909 = vrot.slane %v900, %v908
        %912 = vmatprep.subr.mxu0 %v869
        %913 = vmatpush1.msra.mxu0 %v868
        %914 = vmatprep.subr.mxu0 %v871
        %915 = vmatpush1.msra.mxu0 %v870
        %916 = vmatprep.subr.mxu0 %v873
        %917 = vmatpush1.msra.mxu0 %v872
        %918 = vmatprep.subr.mxu0 %v875
        %919 = vmatpush1.msra.mxu0 %v874
        %920 = vmatprep.subr.mxu0 %v877
        %921 = vmatpush1.msra.mxu0 %v876
        %922 = vmatprep.subr.mxu0 %v879
        %923 = vmatpush1.msra.mxu0 %v878
        %924 = vmatprep.subr.mxu0 %v881
        %925 = vmatpush1.msra.mxu0 %v880
        %926 = vmatprep.subr.mxu0 %v883
        %927 = vmatpush1.msra.mxu0 %v882
        %928 = vmatprep.subr.mxu0 %v885
        %929 = vmatpush1.msra.mxu0 %v884
        %930 = vmatprep.subr.mxu0 %v887
        %931 = vmatpush1.msra.mxu0 %v886
        %932 = vmatprep.subr.mxu0 %v889
        %933 = vmatpush1.msra.mxu0 %v888
        %934 = vmatprep.subr.mxu0 %v891
        %935 = vmatpush1.msra.mxu0 %v890
        %936 = vmatprep.subr.mxu0 %v893
        %937 = vmatpush1.msra.mxu0 %v892
        %938 = vmatprep.subr.mxu0 %v895
        %939 = vmatpush1.msra.mxu0 %v894
        %940 = vmatprep.subr.mxu0 %v897
        %941 = vmatpush1.msra.mxu0 %v896
        %942 = vmatprep.subr.mxu0 %v899
        %943 = vmatpush1.msra.mxu0 %v898
        %944 = vmatprep.subr.mxu0 0.0
        %945 = vmatpush1.msra.mxu0 0.0
        %946 = vmatprep.subr.mxu0 0.0
        %947 = vmatpush1.msra.mxu0 0.0
        %948 = vmatprep.subr.mxu0 0.0
        %949 = vmatpush1.msra.mxu0 0.0
        %950 = vmatprep.subr.mxu0 0.0
        %951 = vmatpush1.msra.mxu0 0.0
        %952 = vmatprep.subr.mxu0 0.0
        %953 = vmatpush1.msra.mxu0 0.0
        %954 = vmatprep.subr.mxu0 0.0
        %955 = vmatpush1.msra.mxu0 0.0
        %956 = vmatprep.subr.mxu0 0.0
        %957 = vmatpush1.msra.mxu0 0.0
        %958 = vmatprep.subr.mxu0 0.0
        %959 = vmatpush1.msra.mxu0 0.0
        %960 = vmatprep.subr.mxu0 0.0
        %961 = vmatpush1.msra.mxu0 0.0
        %962 = vmatprep.subr.mxu0 0.0
        %963 = vmatpush1.msra.mxu0 0.0
        %964 = vmatprep.subr.mxu0 0.0
        %965 = vmatpush1.msra.mxu0 0.0
        %966 = vmatprep.subr.mxu0 0.0
        %967 = vmatpush1.msra.mxu0 0.0
        %968 = vmatprep.subr.mxu0 0.0
        %969 = vmatpush1.msra.mxu0 0.0
        %970 = vmatprep.subr.mxu0 0.0
        %971 = vmatpush1.msra.mxu0 0.0
        %972 = vmatprep.subr.mxu0 0.0
        %973 = vmatpush1.msra.mxu0 0.0
        %974 = vmatprep.subr.mxu0 0.0
        %975 = vmatpush1.msra.mxu0 0.0
        %976 = vmatprep.mubr.f32.mxu0 0.0
        %977 = vmatmul.mubr.f32.gmra.mrb[0].mxu0 %v852
        %v978 = vpop.f32.mrb[0].mxu0
        %v979 = vadd.f32 %v905, %v978
        %v980 = vpop.f32.mrb[0].mxu0
        %v981 = vadd.f32 %v909, %v980
        %982 = vmatprep.mubr.f32.mxu0 0.0
        %983 = vmatmul.mubr.f32.gmra.mrb[0].mxu0 %v853
        %v984 = vpop.f32.mrb[0].mxu0
        %v985 = vadd.f32 %v905, %v984
        %v986 = vpop.f32.mrb[0].mxu0
        %v987 = vadd.f32 %v909, %v986
        %988 = vmatprep.mubr.f32.mxu0 0.0
        %989 = vmatmul.mubr.f32.gmra.mrb[0].mxu0 %v854
        %v990 = vpop.f32.mrb[0].mxu0
        %v991 = vadd.f32 %v905, %v990
        %v992 = vpop.f32.mrb[0].mxu0
        %v993 = vadd.f32 %v909, %v992
        %994 = vmatprep.mubr.f32.mxu0 0.0
        %995 = vmatmul.mubr.f32.gmra.mrb[0].mxu0 %v855
        %v996 = vpop.f32.mrb[0].mxu0
        %v997 = vadd.f32 %v905, %v996
        %v998 = vpop.f32.mrb[0].mxu0
        %v999 = vadd.f32 %v909, %v998
        %1000 = vmatprep.mubr.f32.mxu0 0.0
        %1001 = vmatmul.mubr.f32.gmra.mrb[0].mxu0 %v856
        %v1002 = vpop.f32.mrb[0].mxu0
        %v1003 = vadd.f32 %v905, %v1002
        %v1004 = vpop.f32.mrb[0].mxu0
        %v1005 = vadd.f32 %v909, %v1004
        %1006 = vmatprep.mubr.f32.mxu0 0.0
        %1007 = vmatmul.mubr.f32.gmra.mrb[0].mxu0 %v857
        %v1008 = vpop.f32.mrb[0].mxu0
        %v1009 = vadd.f32 %v905, %v1008
        %v1010 = vpop.f32.mrb[0].mxu0
        %v1011 = vadd.f32 %v909, %v1010
        %1012 = vmatprep.mubr.f32.mxu0 0.0
        %1013 = vmatmul.mubr.f32.gmra.mrb[0].mxu0 %v858
        %v1014 = vpop.f32.mrb[0].mxu0
        %v1015 = vadd.f32 %v905, %v1014
        %v1016 = vpop.f32.mrb[0].mxu0
        %v1017 = vadd.f32 %v909, %v1016
        %1018 = vmatprep.mubr.f32.mxu0 0.0
        %1019 = vmatmul.mubr.f32.gmra.mrb[0].mxu0 %v859
        %v1020 = vpop.f32.mrb[0].mxu0
        %v1021 = vadd.f32 %v905, %v1020
        %v1022 = vpop.f32.mrb[0].mxu0
        %v1023 = vadd.f32 %v909, %v1022
        %1024 = vmatprep.mubr.f32.mxu0 0.0
        %1025 = vmatmul.mubr.f32.gmra.mrb[0].mxu0 %v860
        %v1026 = vpop.f32.mrb[0].mxu0
        %v1027 = vadd.f32 %v905, %v1026
        %v1028 = vpop.f32.mrb[0].mxu0
        %v1029 = vadd.f32 %v909, %v1028
        %1030 = vmatprep.mubr.f32.mxu0 0.0
        %1031 = vmatmul.mubr.f32.gmra.mrb[0].mxu0 %v861
        %v1032 = vpop.f32.mrb[0].mxu0
        %v1033 = vadd.f32 %v905, %v1032
        %v1034 = vpop.f32.mrb[0].mxu0
        %v1035 = vadd.f32 %v909, %v1034
        %1036 = vmatprep.mubr.f32.mxu0 0.0
        %1037 = vmatmul.mubr.f32.gmra.mrb[0].mxu0 %v862
        %v1038 = vpop.f32.mrb[0].mxu0
        %v1039 = vadd.f32 %v905, %v1038
        %v1040 = vpop.f32.mrb[0].mxu0
        %v1041 = vadd.f32 %v909, %v1040
        %1042 = vmatprep.mubr.f32.mxu0 0.0
        %1043 = vmatmul.mubr.f32.gmra.mrb[0].mxu0 %v863
        %v1044 = vpop.f32.mrb[0].mxu0
        %v1045 = vadd.f32 %v905, %v1044
        %v1046 = vpop.f32.mrb[0].mxu0
        %v1047 = vadd.f32 %v909, %v1046
        %1048 = vmatprep.mubr.f32.mxu0 0.0
        %1049 = vmatmul.mubr.f32.gmra.mrb[0].mxu0 %v864
        %v1050 = vpop.f32.mrb[0].mxu0
        %v1051 = vadd.f32 %v905, %v1050
        %v1052 = vpop.f32.mrb[0].mxu0
        %v1053 = vadd.f32 %v909, %v1052
        %1054 = vmatprep.mubr.f32.mxu0 0.0
        %1055 = vmatmul.mubr.f32.gmra.mrb[0].mxu0 %v865
        %v1056 = vpop.f32.mrb[0].mxu0
        %v1057 = vadd.f32 %v905, %v1056
        %v1058 = vpop.f32.mrb[0].mxu0
        %v1059 = vadd.f32 %v909, %v1058
        %1060 = vmatprep.mubr.f32.mxu0 0.0
        %1061 = vmatmul.mubr.f32.gmra.mrb[0].mxu0 %v866
        %v1062 = vpop.f32.mrb[0].mxu0
        %v1063 = vadd.f32 %v905, %v1062
        %v1064 = vpop.f32.mrb[0].mxu0
        %v1065 = vadd.f32 %v909, %v1064
        %1066 = vmatprep.mubr.f32.mxu0 0.0
        %1067 = vmatmul.mubr.f32.gmra.mrb[0].mxu0 %v867
        %v1068 = vpop.f32.mrb[0].mxu0
        %v1069 = vadd.f32 %v905, %v1068
        %v1070 = vpop.f32.mrb[0].mxu0
        %v1071 = vadd.f32 %v909, %v1070
        %1072 = vdwg.mxu0
        %v1073 = vmul.f32 %v981, 0.5
        %v1074 = vmul.f32 %v987, 0.5
        %v1075 = vmul.f32 %v993, 0.5
        %v1076 = vmul.f32 %v999, 0.5
        %v1077 = vmul.f32 %v1005, 0.5
        %v1078 = vmul.f32 %v1011, 0.5
        %v1079 = vmul.f32 %v1017, 0.5
        %v1080 = vmul.f32 %v1023, 0.5
        %v1081 = vmul.f32 %v1029, 0.5
        %v1082 = vmul.f32 %v1035, 0.5
        %v1083 = vmul.f32 %v1041, 0.5
        %v1084 = vmul.f32 %v1047, 0.5
        %v1085 = vmul.f32 %v1053, 0.5
        %v1086 = vmul.f32 %v1059, 0.5
        %v1087 = vmul.f32 %v1065, 0.5
        %v1088 = vmul.f32 %v1071, 0.5
        %v1089 = vmul.f32 %v1073, 1.442695
        %v1090 = vpow.pop %v1089
        %v1091 = vmul.f32 %v1074, 1.442695
        %v1092 = vpow.pop %v1091
        %v1093 = vmul.f32 %v1075, 1.442695
        %v1094 = vpow.pop %v1093
        %v1095 = vmul.f32 %v1076, 1.442695
        %v1096 = vpow.pop %v1095
        %v1097 = vmul.f32 %v1077, 1.442695
        %v1098 = vpow.pop %v1097
        %v1099 = vmul.f32 %v1078, 1.442695
        %v1100 = vpow.pop %v1099
        %v1101 = vmul.f32 %v1079, 1.442695
        %v1102 = vpow.pop %v1101
        %v1103 = vmul.f32 %v1080, 1.442695
        %v1104 = vpow.pop %v1103
        %v1105 = vmul.f32 %v1081, 1.442695
        %v1106 = vpow.pop %v1105
        %v1107 = vmul.f32 %v1082, 1.442695
        %v1108 = vpow.pop %v1107
        %v1109 = vmul.f32 %v1083, 1.442695
        %v1110 = vpow.pop %v1109
        %v1111 = vmul.f32 %v1084, 1.442695
        %v1112 = vpow.pop %v1111
        %v1113 = vmul.f32 %v1085, 1.442695
        %v1114 = vpow.pop %v1113
        %v1115 = vmul.f32 %v1086, 1.442695
        %v1116 = vpow.pop %v1115
        %v1117 = vmul.f32 %v1087, 1.442695
        %v1118 = vpow.pop %v1117
        %v1119 = vmul.f32 %v1088, 1.442695
        %v1120 = vpow.pop %v1119
        %v1121 = vld [vmem:[%s446] sm:$0xff]
        %v1122 = vld [vmem:[%s446 + $0x8] sm:$0xff]
        %v1123 = vld [vmem:[%s446 + $0x10] sm:$0xff]
        %v1124 = vld [vmem:[%s446 + $0x18] sm:$0xff]
        %v1125 = vld [vmem:[%s446 + $0x20] sm:$0xff]
        %v1126 = vld [vmem:[%s446 + $0x28] sm:$0xff]
        %v1127 = vld [vmem:[%s446 + $0x30] sm:$0xff]
        %v1128 = vld [vmem:[%s446 + $0x38] sm:$0xff]
        %v1129 = vld [vmem:[%s446 + $0x40] sm:$0xff]
        %v1130 = vld [vmem:[%s446 + $0x48] sm:$0xff]
        %v1131 = vld [vmem:[%s446 + $0x50] sm:$0xff]
        %v1132 = vld [vmem:[%s446 + $0x58] sm:$0xff]
        %v1133 = vld [vmem:[%s446 + $0x60] sm:$0xff]
        %v1134 = vld [vmem:[%s446 + $0x68] sm:$0xff]
        %v1135 = vld [vmem:[%s446 + $0x70] sm:$0xff]
        %v1136 = vld [vmem:[%s446 + $0x78] sm:$0xff]
        %v1137 = vmul.f32 %v1121, %v1090
        %v1138 = vmul.f32 %v1122, %v1092
        %v1139 = vmul.f32 %v1123, %v1094
        %v1140 = vmul.f32 %v1124, %v1096
        %v1141 = vmul.f32 %v1125, %v1098
        %v1142 = vmul.f32 %v1126, %v1100
        %v1143 = vmul.f32 %v1127, %v1102
        %v1144 = vmul.f32 %v1128, %v1104
        %v1145 = vmul.f32 %v1129, %v1106
        %v1146 = vmul.f32 %v1130, %v1108
        %v1147 = vmul.f32 %v1131, %v1110
        %v1148 = vmul.f32 %v1132, %v1112
        %v1149 = vmul.f32 %v1133, %v1114
        %v1150 = vmul.f32 %v1134, %v1116
        %v1151 = vmul.f32 %v1135, %v1118
        %v1152 = vmul.f32 %v1136, %v1120
        %v1153 = vadd.f32 %v979, %v1137
        %v1154 = vadd.f32 %v985, %v1138
        %v1155 = vadd.f32 %v991, %v1139
        %v1156 = vadd.f32 %v997, %v1140
        %v1157 = vadd.f32 %v1003, %v1141
        %v1158 = vadd.f32 %v1009, %v1142
        %v1159 = vadd.f32 %v1015, %v1143
        %v1160 = vadd.f32 %v1021, %v1144
        %v1161 = vadd.f32 %v1027, %v1145
        %v1162 = vadd.f32 %v1033, %v1146
        %v1163 = vadd.f32 %v1039, %v1147
        %v1164 = vadd.f32 %v1045, %v1148
        %v1165 = vadd.f32 %v1051, %v1149
        %v1166 = vadd.f32 %v1057, %v1150
        %v1167 = vadd.f32 %v1063, %v1151
        %v1168 = vadd.f32 %v1069, %v1152
        %1169 = vmax.xlane.f32.xlu0 %v1153
        %v1170 = vpop.xlane.xlu0 %1169
        %1171 = vmax.xlane.f32.xlu0 %v1154
        %v1172 = vpop.xlane.xlu0 %1171
        %1173 = vmax.xlane.f32.xlu0 %v1155
        %v1174 = vpop.xlane.xlu0 %1173
        %1175 = vmax.xlane.f32.xlu0 %v1156
        %v1176 = vpop.xlane.xlu0 %1175
        %1177 = vmax.xlane.f32.xlu0 %v1157
        %v1178 = vpop.xlane.xlu0 %1177
        %1179 = vmax.xlane.f32.xlu0 %v1158
        %v1180 = vpop.xlane.xlu0 %1179
        %1181 = vmax.xlane.f32.xlu0 %v1159
        %v1182 = vpop.xlane.xlu0 %1181
        %1183 = vmax.xlane.f32.xlu0 %v1160
        %v1184 = vpop.xlane.xlu0 %1183
        %1185 = vmax.xlane.f32.xlu0 %v1161
        %v1186 = vpop.xlane.xlu0 %1185
        %1187 = vmax.xlane.f32.xlu0 %v1162
        %v1188 = vpop.xlane.xlu0 %1187
        %1189 = vmax.xlane.f32.xlu0 %v1163
        %v1190 = vpop.xlane.xlu0 %1189
        %1191 = vmax.xlane.f32.xlu0 %v1164
        %v1192 = vpop.xlane.xlu0 %1191
        %1193 = vmax.xlane.f32.xlu0 %v1165
        %v1194 = vpop.xlane.xlu0 %1193
        %1195 = vmax.xlane.f32.xlu0 %v1166
        %v1196 = vpop.xlane.xlu0 %1195
        %1197 = vmax.xlane.f32.xlu0 %v1167
        %v1198 = vpop.xlane.xlu0 %1197
        %1199 = vmax.xlane.f32.xlu0 %v1168
        %v1200 = vpop.xlane.xlu0 %1199
        %v1201 = vsub.f32 %v1153, %v1170
        %v1202 = vsub.f32 %v1154, %v1172
        %v1203 = vsub.f32 %v1155, %v1174
        %v1204 = vsub.f32 %v1156, %v1176
        %v1205 = vsub.f32 %v1157, %v1178
        %v1206 = vsub.f32 %v1158, %v1180
        %v1207 = vsub.f32 %v1159, %v1182
        %v1208 = vsub.f32 %v1160, %v1184
        %v1209 = vsub.f32 %v1161, %v1186
        %v1210 = vsub.f32 %v1162, %v1188
        %v1211 = vsub.f32 %v1163, %v1190
        %v1212 = vsub.f32 %v1164, %v1192
        %v1213 = vsub.f32 %v1165, %v1194
        %v1214 = vsub.f32 %v1166, %v1196
        %v1215 = vsub.f32 %v1167, %v1198
        %v1216 = vsub.f32 %v1168, %v1200
        %v1217 = vpack.c.bf16 %v1202, %v1201
        %v1218 = vpack.c.bf16 %v1204, %v1203
        %v1219 = vpack.c.bf16 %v1206, %v1205
        %v1220 = vpack.c.bf16 %v1208, %v1207
        %v1221 = vpack.c.bf16 %v1210, %v1209
        %v1222 = vpack.c.bf16 %v1212, %v1211
        %v1223 = vpack.c.bf16 %v1214, %v1213
        %v1224 = vpack.c.bf16 %v1216, %v1215
        %v1226 = vmul.bf16 %v1217, 1069105081
        %v1227 = vpow.bf16.pop %v1226
        %v1229 = vmul.bf16 %v1218, 1069105081
        %v1230 = vpow.bf16.pop %v1229
        %v1232 = vmul.bf16 %v1219, 1069105081
        %v1233 = vpow.bf16.pop %v1232
        %v1235 = vmul.bf16 %v1220, 1069105081
        %v1236 = vpow.bf16.pop %v1235
        %v1238 = vmul.bf16 %v1221, 1069105081
        %v1239 = vpow.bf16.pop %v1238
        %v1241 = vmul.bf16 %v1222, 1069105081
        %v1242 = vpow.bf16.pop %v1241
        %v1244 = vmul.bf16 %v1223, 1069105081
        %v1245 = vpow.bf16.pop %v1244
        %v1247 = vmul.bf16 %v1224, 1069105081
        %v1248 = vpow.bf16.pop %v1247
        %v1249 = vunpack.c.l.bf16 %v1227
        %v1250 = vunpack.c.h.bf16 %v1227
        %v1251 = vunpack.c.l.bf16 %v1230
        %v1252 = vunpack.c.h.bf16 %v1230
        %v1253 = vunpack.c.l.bf16 %v1233
        %v1254 = vunpack.c.h.bf16 %v1233
        %v1255 = vunpack.c.l.bf16 %v1236
        %v1256 = vunpack.c.h.bf16 %v1236
        %v1257 = vunpack.c.l.bf16 %v1239
        %v1258 = vunpack.c.h.bf16 %v1239
        %v1259 = vunpack.c.l.bf16 %v1242
        %v1260 = vunpack.c.h.bf16 %v1242
        %v1261 = vunpack.c.l.bf16 %v1245
        %v1262 = vunpack.c.h.bf16 %v1245
        %v1263 = vunpack.c.l.bf16 %v1248
        %v1264 = vunpack.c.h.bf16 %v1248
        %1265 = vadd.xlane.f32.xlu0 %v1249
        %v1266 = vpop.xlane.xlu0 %1265
        %1267 = vadd.xlane.f32.xlu0 %v1250
        %v1268 = vpop.xlane.xlu0 %1267
        %1269 = vadd.xlane.f32.xlu0 %v1251
        %v1270 = vpop.xlane.xlu0 %1269
        %1271 = vadd.xlane.f32.xlu0 %v1252
        %v1272 = vpop.xlane.xlu0 %1271
        %1273 = vadd.xlane.f32.xlu0 %v1253
        %v1274 = vpop.xlane.xlu0 %1273
        %1275 = vadd.xlane.f32.xlu0 %v1254
        %v1276 = vpop.xlane.xlu0 %1275
        %1277 = vadd.xlane.f32.xlu0 %v1255
        %v1278 = vpop.xlane.xlu0 %1277
        %1279 = vadd.xlane.f32.xlu0 %v1256
        %v1280 = vpop.xlane.xlu0 %1279
        %1281 = vadd.xlane.f32.xlu0 %v1257
        %v1282 = vpop.xlane.xlu0 %1281
        %1283 = vadd.xlane.f32.xlu0 %v1258
        %v1284 = vpop.xlane.xlu0 %1283
        %1285 = vadd.xlane.f32.xlu0 %v1259
        %v1286 = vpop.xlane.xlu0 %1285
        %1287 = vadd.xlane.f32.xlu0 %v1260
        %v1288 = vpop.xlane.xlu0 %1287
        %1289 = vadd.xlane.f32.xlu0 %v1261
        %v1290 = vpop.xlane.xlu0 %1289
        %1291 = vadd.xlane.f32.xlu0 %v1262
        %v1292 = vpop.xlane.xlu0 %1291
        %1293 = vadd.xlane.f32.xlu0 %v1263
        %v1294 = vpop.xlane.xlu0 %1293
        %1295 = vadd.xlane.f32.xlu0 %v1264
        %v1296 = vpop.xlane.xlu0 %1295
        %v1297 = vrcp.pop %v1266
        %v1298 = vrcp.pop %v1268
        %v1299 = vrcp.pop %v1270
        %v1300 = vrcp.pop %v1272
        %v1301 = vrcp.pop %v1274
        %v1302 = vrcp.pop %v1276
        %v1303 = vrcp.pop %v1278
        %v1304 = vrcp.pop %v1280
        %v1305 = vrcp.pop %v1282
        %v1306 = vrcp.pop %v1284
        %v1307 = vrcp.pop %v1286
        %v1308 = vrcp.pop %v1288
        %v1309 = vrcp.pop %v1290
        %v1310 = vrcp.pop %v1292
        %v1311 = vrcp.pop %v1294
        %v1312 = vrcp.pop %v1296
        %v1313 = vmul.f32 %v1249, %v1297
        %v1314 = vmul.f32 %v1250, %v1298
        %v1315 = vmul.f32 %v1251, %v1299
        %v1316 = vmul.f32 %v1252, %v1300
        %v1317 = vmul.f32 %v1253, %v1301
        %v1318 = vmul.f32 %v1254, %v1302
        %v1319 = vmul.f32 %v1255, %v1303
        %v1320 = vmul.f32 %v1256, %v1304
        %v1321 = vmul.f32 %v1257, %v1305
        %v1322 = vmul.f32 %v1258, %v1306
        %v1323 = vmul.f32 %v1259, %v1307
        %v1324 = vmul.f32 %v1260, %v1308
        %v1325 = vmul.f32 %v1261, %v1309
        %v1326 = vmul.f32 %v1262, %v1310
        %v1327 = vmul.f32 %v1263, %v1311
        %v1328 = vmul.f32 %v1264, %v1312
        %v1329 = vpack.c.bf16 %v1314, %v1313
        %v1330 = vpack.c.bf16 %v1316, %v1315
        %v1331 = vpack.c.bf16 %v1318, %v1317
        %v1332 = vpack.c.bf16 %v1320, %v1319
        %v1333 = vpack.c.bf16 %v1322, %v1321
        %v1334 = vpack.c.bf16 %v1324, %v1323
        %v1335 = vpack.c.bf16 %v1326, %v1325
        %v1336 = vpack.c.bf16 %v1328, %v1327
        %v1337 = vld [vmem:[#allocation10] sm:$0xff]
        %v1338 = vld [vmem:[#allocation10 + $0x8] sm:$0xff]
        %v1339 = vld [vmem:[#allocation10 + $0x10] sm:$0xff]
        %v1340 = vld [vmem:[#allocation10 + $0x18] sm:$0xff]
        %v1341 = vld [vmem:[#allocation10 + $0x20] sm:$0xff]
        %v1342 = vld [vmem:[#allocation10 + $0x28] sm:$0xff]
        %v1343 = vld [vmem:[#allocation10 + $0x30] sm:$0xff]
        %v1344 = vld [vmem:[#allocation10 + $0x38] sm:$0xff]
        %v1345 = vld [vmem:[#allocation10 + $0x40] sm:$0xff]
        %v1346 = vld [vmem:[#allocation10 + $0x48] sm:$0xff]
        %v1347 = vld [vmem:[#allocation10 + $0x50] sm:$0xff]
        %v1348 = vld [vmem:[#allocation10 + $0x58] sm:$0xff]
        %v1349 = vld [vmem:[#allocation10 + $0x60] sm:$0xff]
        %v1350 = vld [vmem:[#allocation10 + $0x68] sm:$0xff]
        %v1351 = vld [vmem:[#allocation10 + $0x70] sm:$0xff]
        %v1352 = vld [vmem:[#allocation10 + $0x78] sm:$0xff]
        %v1353 = vld [vmem:[%s7] sm:$0x3]
        %v1355 = vlaneseq
        %v1356 = vshrl.u32 %v1355, 7
        %v1357 = vsub.s32 0, %v1356
        %v1358 = vrot.slane %v1353, %v1357
        %v1359 = vlaneseq
        %v1360 = vshrl.u32 %v1359, 7
        %v1361 = vsub.s32 1, %v1360
        %v1362 = vrot.slane %v1353, %v1361
        %v1381 = vunpack.c.l.b16 %v1337
        %v1382 = vunpack.c.h.b16 %v1337
        %v1383 = vunpack.c.l.b16 %v1338
        %v1384 = vunpack.c.h.b16 %v1338
        %v1385 = vunpack.c.l.b16 %v1339
        %v1386 = vunpack.c.h.b16 %v1339
        %v1387 = vunpack.c.l.b16 %v1340
        %v1388 = vunpack.c.h.b16 %v1340
        %v1389 = vunpack.c.l.b16 %v1341
        %v1390 = vunpack.c.h.b16 %v1341
        %v1391 = vunpack.c.l.b16 %v1342
        %v1392 = vunpack.c.h.b16 %v1342
        %v1393 = vunpack.c.l.b16 %v1343
        %v1394 = vunpack.c.h.b16 %v1343
        %v1395 = vunpack.c.l.b16 %v1344
        %v1396 = vunpack.c.h.b16 %v1344
        %v1397 = vunpack.c.l.b16 %v1345
        %v1398 = vunpack.c.h.b16 %v1345
        %v1399 = vunpack.c.l.b16 %v1346
        %v1400 = vunpack.c.h.b16 %v1346
        %v1401 = vunpack.c.l.b16 %v1347
        %v1402 = vunpack.c.h.b16 %v1347
        %v1403 = vunpack.c.l.b16 %v1348
        %v1404 = vunpack.c.h.b16 %v1348
        %v1405 = vunpack.c.l.b16 %v1349
        %v1406 = vunpack.c.h.b16 %v1349
        %v1407 = vunpack.c.l.b16 %v1350
        %v1408 = vunpack.c.h.b16 %v1350
        %v1409 = vunpack.c.l.b16 %v1351
        %v1410 = vunpack.c.h.b16 %v1351
        %v1411 = vunpack.c.l.b16 %v1352
        %v1412 = vunpack.c.h.b16 %v1352
        %v1413 = vpack.c.b16 %v1383, %v1381
        %v1414 = vpack.c.b16 %v1384, %v1382
        %v1415 = vpack.c.b16 %v1387, %v1385
        %v1416 = vpack.c.b16 %v1388, %v1386
        %v1417 = vpack.c.b16 %v1391, %v1389
        %v1418 = vpack.c.b16 %v1392, %v1390
        %v1419 = vpack.c.b16 %v1395, %v1393
        %v1420 = vpack.c.b16 %v1396, %v1394
        %v1421 = vpack.c.b16 %v1399, %v1397
        %v1422 = vpack.c.b16 %v1400, %v1398
        %v1423 = vpack.c.b16 %v1403, %v1401
        %v1424 = vpack.c.b16 %v1404, %v1402
        %v1425 = vpack.c.b16 %v1407, %v1405
        %v1426 = vpack.c.b16 %v1408, %v1406
        %v1427 = vpack.c.b16 %v1411, %v1409
        %v1428 = vpack.c.b16 %v1412, %v1410
        %1445 = vmatprep.subr.bf16.mxu0 %v1414
        %1446 = vmatpush1.bf16.msra.mxu0 %v1413
        %1447 = vmatprep.subr.bf16.mxu0 %v1416
        %1448 = vmatpush1.bf16.msra.mxu0 %v1415
        %1449 = vmatprep.subr.bf16.mxu0 %v1418
        %1450 = vmatpush1.bf16.msra.mxu0 %v1417
        %1451 = vmatprep.subr.bf16.mxu0 %v1420
        %1452 = vmatpush1.bf16.msra.mxu0 %v1419
        %1453 = vmatprep.subr.bf16.mxu0 %v1422
        %1454 = vmatpush1.bf16.msra.mxu0 %v1421
        %1455 = vmatprep.subr.bf16.mxu0 %v1424
        %1456 = vmatpush1.bf16.msra.mxu0 %v1423
        %1457 = vmatprep.subr.bf16.mxu0 %v1426
        %1458 = vmatpush1.bf16.msra.mxu0 %v1425
        %1459 = vmatprep.subr.bf16.mxu0 %v1428
        %1460 = vmatpush1.bf16.msra.mxu0 %v1427
        %1461 = vmatprep.subr.bf16.mxu0 0
        %1462 = vmatpush1.bf16.msra.mxu0 0
        %1463 = vmatprep.subr.bf16.mxu0 0
        %1464 = vmatpush1.bf16.msra.mxu0 0
        %1465 = vmatprep.subr.bf16.mxu0 0
        %1466 = vmatpush1.bf16.msra.mxu0 0
        %1467 = vmatprep.subr.bf16.mxu0 0
        %1468 = vmatpush1.bf16.msra.mxu0 0
        %1469 = vmatprep.subr.bf16.mxu0 0
        %1470 = vmatpush1.bf16.msra.mxu0 0
        %1471 = vmatprep.subr.bf16.mxu0 0
        %1472 = vmatpush1.bf16.msra.mxu0 0
        %1473 = vmatprep.subr.bf16.mxu0 0
        %1474 = vmatpush1.bf16.msra.mxu0 0
        %1475 = vmatprep.subr.bf16.mxu0 0
        %1476 = vmatpush1.bf16.msra.mxu0 0
        %1477 = vmatprep.mubr.bf16.mxu0 0
        %1478 = vmatmul.mubr.bf16.gmra.mrb[0].mxu0 %v1329
        %v1479 = vpop.f32.mrb[0].mxu0
        %v1480 = vadd.f32 %v1358, %v1479
        %v1481 = vpop.f32.mrb[0].mxu0
        %v1482 = vadd.f32 %v1362, %v1481
        %v1483 = vpop.f32.mrb[0].mxu0
        %v1484 = vadd.f32 %v1358, %v1483
        %v1485 = vpop.f32.mrb[0].mxu0
        %v1486 = vadd.f32 %v1362, %v1485
        %1487 = vmatprep.mubr.bf16.mxu0 0
        %1488 = vmatmul.mubr.bf16.gmra.mrb[0].mxu0 %v1330
        %v1489 = vpop.f32.mrb[0].mxu0
        %v1490 = vadd.f32 %v1358, %v1489
        %v1491 = vpop.f32.mrb[0].mxu0
        %v1492 = vadd.f32 %v1362, %v1491
        %v1493 = vpop.f32.mrb[0].mxu0
        %v1494 = vadd.f32 %v1358, %v1493
        %v1495 = vpop.f32.mrb[0].mxu0
        %v1496 = vadd.f32 %v1362, %v1495
        %1497 = vmatprep.mubr.bf16.mxu0 0
        %1498 = vmatmul.mubr.bf16.gmra.mrb[0].mxu0 %v1331
        %v1499 = vpop.f32.mrb[0].mxu0
        %v1500 = vadd.f32 %v1358, %v1499
        %v1501 = vpop.f32.mrb[0].mxu0
        %v1502 = vadd.f32 %v1362, %v1501
        %v1503 = vpop.f32.mrb[0].mxu0
        %v1504 = vadd.f32 %v1358, %v1503
        %v1505 = vpop.f32.mrb[0].mxu0
        %v1506 = vadd.f32 %v1362, %v1505
        %1507 = vmatprep.mubr.bf16.mxu0 0
        %1508 = vmatmul.mubr.bf16.gmra.mrb[0].mxu0 %v1332
        %v1509 = vpop.f32.mrb[0].mxu0
        %v1510 = vadd.f32 %v1358, %v1509
        %v1511 = vpop.f32.mrb[0].mxu0
        %v1512 = vadd.f32 %v1362, %v1511
        %v1513 = vpop.f32.mrb[0].mxu0
        %v1514 = vadd.f32 %v1358, %v1513
        %v1515 = vpop.f32.mrb[0].mxu0
        %v1516 = vadd.f32 %v1362, %v1515
        %1517 = vmatprep.mubr.bf16.mxu0 0
        %1518 = vmatmul.mubr.bf16.gmra.mrb[0].mxu0 %v1333
        %v1519 = vpop.f32.mrb[0].mxu0
        %v1520 = vadd.f32 %v1358, %v1519
        %v1521 = vpop.f32.mrb[0].mxu0
        %v1522 = vadd.f32 %v1362, %v1521
        %v1523 = vpop.f32.mrb[0].mxu0
        %v1524 = vadd.f32 %v1358, %v1523
        %v1525 = vpop.f32.mrb[0].mxu0
        %v1526 = vadd.f32 %v1362, %v1525
        %1527 = vmatprep.mubr.bf16.mxu0 0
        %1528 = vmatmul.mubr.bf16.gmra.mrb[0].mxu0 %v1334
        %v1529 = vpop.f32.mrb[0].mxu0
        %v1530 = vadd.f32 %v1358, %v1529
        %v1531 = vpop.f32.mrb[0].mxu0
        %v1532 = vadd.f32 %v1362, %v1531
        %v1533 = vpop.f32.mrb[0].mxu0
        %v1534 = vadd.f32 %v1358, %v1533
        %v1535 = vpop.f32.mrb[0].mxu0
        %v1536 = vadd.f32 %v1362, %v1535
        %1537 = vmatprep.mubr.bf16.mxu0 0
        %1538 = vmatmul.mubr.bf16.gmra.mrb[0].mxu0 %v1335
        %v1539 = vpop.f32.mrb[0].mxu0
        %v1540 = vadd.f32 %v1358, %v1539
        %v1541 = vpop.f32.mrb[0].mxu0
        %v1542 = vadd.f32 %v1362, %v1541
        %v1543 = vpop.f32.mrb[0].mxu0
        %v1544 = vadd.f32 %v1358, %v1543
        %v1545 = vpop.f32.mrb[0].mxu0
        %v1546 = vadd.f32 %v1362, %v1545
        %1547 = vmatprep.mubr.bf16.mxu0 0
        %1548 = vmatmul.mubr.bf16.gmra.mrb[0].mxu0 %v1336
        %v1549 = vpop.f32.mrb[0].mxu0
        %v1550 = vadd.f32 %v1358, %v1549
        %v1551 = vpop.f32.mrb[0].mxu0
        %v1552 = vadd.f32 %v1362, %v1551
        %v1553 = vpop.f32.mrb[0].mxu0
        %v1554 = vadd.f32 %v1358, %v1553
        %v1555 = vpop.f32.mrb[0].mxu0
        %v1556 = vadd.f32 %v1362, %v1555
        %1557 = vdwg.mxu0
        %v1558 = vmax.f32 %v1480, %v1482
        %1559 = vmax.xlane.f32.xlu0 %v1558
        %v1560 = vpop.xlane.xlu0 %1559
        %v1561 = vmax.f32 %v1484, %v1486
        %1562 = vmax.xlane.f32.xlu0 %v1561
        %v1563 = vpop.xlane.xlu0 %1562
        %v1564 = vmax.f32 %v1490, %v1492
        %1565 = vmax.xlane.f32.xlu0 %v1564
        %v1566 = vpop.xlane.xlu0 %1565
        %v1567 = vmax.f32 %v1494, %v1496
        %1568 = vmax.xlane.f32.xlu0 %v1567
        %v1569 = vpop.xlane.xlu0 %1568
        %v1570 = vmax.f32 %v1500, %v1502
        %1571 = vmax.xlane.f32.xlu0 %v1570
        %v1572 = vpop.xlane.xlu0 %1571
        %v1573 = vmax.f32 %v1504, %v1506
        %1574 = vmax.xlane.f32.xlu0 %v1573
        %v1575 = vpop.xlane.xlu0 %1574
        %v1576 = vmax.f32 %v1510, %v1512
        %1577 = vmax.xlane.f32.xlu0 %v1576
        %v1578 = vpop.xlane.xlu0 %1577
        %v1579 = vmax.f32 %v1514, %v1516
        %1580 = vmax.xlane.f32.xlu0 %v1579
        %v1581 = vpop.xlane.xlu0 %1580
        %v1582 = vmax.f32 %v1520, %v1522
        %1583 = vmax.xlane.f32.xlu0 %v1582
        %v1584 = vpop.xlane.xlu0 %1583
        %v1585 = vmax.f32 %v1524, %v1526
        %1586 = vmax.xlane.f32.xlu0 %v1585
        %v1587 = vpop.xlane.xlu0 %1586
        %v1588 = vmax.f32 %v1530, %v1532
        %1589 = vmax.xlane.f32.xlu0 %v1588
        %v1590 = vpop.xlane.xlu0 %1589
        %v1591 = vmax.f32 %v1534, %v1536
        %1592 = vmax.xlane.f32.xlu0 %v1591
        %v1593 = vpop.xlane.xlu0 %1592
        %v1594 = vmax.f32 %v1540, %v1542
        %1595 = vmax.xlane.f32.xlu0 %v1594
        %v1596 = vpop.xlane.xlu0 %1595
        %v1597 = vmax.f32 %v1544, %v1546
        %1598 = vmax.xlane.f32.xlu0 %v1597
        %v1599 = vpop.xlane.xlu0 %1598
        %v1600 = vmax.f32 %v1550, %v1552
        %1601 = vmax.xlane.f32.xlu0 %v1600
        %v1602 = vpop.xlane.xlu0 %1601
        %v1603 = vmax.f32 %v1554, %v1556
        %1604 = vmax.xlane.f32.xlu0 %v1603
        %v1605 = vpop.xlane.xlu0 %1604
        %v1606 = vsub.f32 %v1480, %v1560
        %v1607 = vsub.f32 %v1482, %v1560
        %v1608 = vsub.f32 %v1484, %v1563
        %v1609 = vsub.f32 %v1486, %v1563
        %v1610 = vsub.f32 %v1490, %v1566
        %v1611 = vsub.f32 %v1492, %v1566
        %v1612 = vsub.f32 %v1494, %v1569
        %v1613 = vsub.f32 %v1496, %v1569
        %v1614 = vsub.f32 %v1500, %v1572
        %v1615 = vsub.f32 %v1502, %v1572
        %v1616 = vsub.f32 %v1504, %v1575
        %v1617 = vsub.f32 %v1506, %v1575
        %v1618 = vsub.f32 %v1510, %v1578
        %v1619 = vsub.f32 %v1512, %v1578
        %v1620 = vsub.f32 %v1514, %v1581
        %v1621 = vsub.f32 %v1516, %v1581
        %v1622 = vsub.f32 %v1520, %v1584
        %v1623 = vsub.f32 %v1522, %v1584
        %v1624 = vsub.f32 %v1524, %v1587
        %v1625 = vsub.f32 %v1526, %v1587
        %v1626 = vsub.f32 %v1530, %v1590
        %v1627 = vsub.f32 %v1532, %v1590
        %v1628 = vsub.f32 %v1534, %v1593
        %v1629 = vsub.f32 %v1536, %v1593
        %v1630 = vsub.f32 %v1540, %v1596
        %v1631 = vsub.f32 %v1542, %v1596
        %v1632 = vsub.f32 %v1544, %v1599
        %v1633 = vsub.f32 %v1546, %v1599
        %v1634 = vsub.f32 %v1550, %v1602
        %v1635 = vsub.f32 %v1552, %v1602
        %v1636 = vsub.f32 %v1554, %v1605
        %v1637 = vsub.f32 %v1556, %v1605
        %v1638 = vpack.c.bf16 %v1608, %v1606
        %v1639 = vpack.c.bf16 %v1609, %v1607
        %v1640 = vpack.c.bf16 %v1612, %v1610
        %v1641 = vpack.c.bf16 %v1613, %v1611
        %v1642 = vpack.c.bf16 %v1616, %v1614
        %v1643 = vpack.c.bf16 %v1617, %v1615
        %v1644 = vpack.c.bf16 %v1620, %v1618
        %v1645 = vpack.c.bf16 %v1621, %v1619
        %v1646 = vpack.c.bf16 %v1624, %v1622
        %v1647 = vpack.c.bf16 %v1625, %v1623
        %v1648 = vpack.c.bf16 %v1628, %v1626
        %v1649 = vpack.c.bf16 %v1629, %v1627
        %v1650 = vpack.c.bf16 %v1632, %v1630
        %v1651 = vpack.c.bf16 %v1633, %v1631
        %v1652 = vpack.c.bf16 %v1636, %v1634
        %v1653 = vpack.c.bf16 %v1637, %v1635
        %v1655 = vmul.bf16 %v1638, 1069105081
        %v1656 = vpow.bf16.pop %v1655
        %v1658 = vmul.bf16 %v1639, 1069105081
        %v1659 = vpow.bf16.pop %v1658
        %v1661 = vmul.bf16 %v1640, 1069105081
        %v1662 = vpow.bf16.pop %v1661
        %v1664 = vmul.bf16 %v1641, 1069105081
        %v1665 = vpow.bf16.pop %v1664
        %v1667 = vmul.bf16 %v1642, 1069105081
        %v1668 = vpow.bf16.pop %v1667
        %v1670 = vmul.bf16 %v1643, 1069105081
        %v1671 = vpow.bf16.pop %v1670
        %v1673 = vmul.bf16 %v1644, 1069105081
        %v1674 = vpow.bf16.pop %v1673
        %v1676 = vmul.bf16 %v1645, 1069105081
        %v1677 = vpow.bf16.pop %v1676
        %v1679 = vmul.bf16 %v1646, 1069105081
        %v1680 = vpow.bf16.pop %v1679
        %v1682 = vmul.bf16 %v1647, 1069105081
        %v1683 = vpow.bf16.pop %v1682
        %v1685 = vmul.bf16 %v1648, 1069105081
        %v1686 = vpow.bf16.pop %v1685
        %v1688 = vmul.bf16 %v1649, 1069105081
        %v1689 = vpow.bf16.pop %v1688
        %v1691 = vmul.bf16 %v1650, 1069105081
        %v1692 = vpow.bf16.pop %v1691
        %v1694 = vmul.bf16 %v1651, 1069105081
        %v1695 = vpow.bf16.pop %v1694
        %v1697 = vmul.bf16 %v1652, 1069105081
        %v1698 = vpow.bf16.pop %v1697
        %v1700 = vmul.bf16 %v1653, 1069105081
        %v1701 = vpow.bf16.pop %v1700
        %v1702 = vunpack.c.l.bf16 %v1656
        %v1703 = vunpack.c.l.bf16 %v1659
        %v1704 = vunpack.c.h.bf16 %v1656
        %v1705 = vunpack.c.h.bf16 %v1659
        %v1706 = vunpack.c.l.bf16 %v1662
        %v1707 = vunpack.c.l.bf16 %v1665
        %v1708 = vunpack.c.h.bf16 %v1662
        %v1709 = vunpack.c.h.bf16 %v1665
        %v1710 = vunpack.c.l.bf16 %v1668
        %v1711 = vunpack.c.l.bf16 %v1671
        %v1712 = vunpack.c.h.bf16 %v1668
        %v1713 = vunpack.c.h.bf16 %v1671
        %v1714 = vunpack.c.l.bf16 %v1674
        %v1715 = vunpack.c.l.bf16 %v1677
        %v1716 = vunpack.c.h.bf16 %v1674
        %v1717 = vunpack.c.h.bf16 %v1677
        %v1718 = vunpack.c.l.bf16 %v1680
        %v1719 = vunpack.c.l.bf16 %v1683
        %v1720 = vunpack.c.h.bf16 %v1680
        %v1721 = vunpack.c.h.bf16 %v1683
        %v1722 = vunpack.c.l.bf16 %v1686
        %v1723 = vunpack.c.l.bf16 %v1689
        %v1724 = vunpack.c.h.bf16 %v1686
        %v1725 = vunpack.c.h.bf16 %v1689
        %v1726 = vunpack.c.l.bf16 %v1692
        %v1727 = vunpack.c.l.bf16 %v1695
        %v1728 = vunpack.c.h.bf16 %v1692
        %v1729 = vunpack.c.h.bf16 %v1695
        %v1730 = vunpack.c.l.bf16 %v1698
        %v1731 = vunpack.c.l.bf16 %v1701
        %v1732 = vunpack.c.h.bf16 %v1698
        %v1733 = vunpack.c.h.bf16 %v1701
        %v1734 = vadd.f32 %v1702, %v1703
        %1735 = vadd.xlane.f32.xlu0 %v1734
        %v1736 = vpop.xlane.xlu0 %1735
        %v1737 = vadd.f32 %v1704, %v1705
        %1738 = vadd.xlane.f32.xlu0 %v1737
        %v1739 = vpop.xlane.xlu0 %1738
        %v1740 = vadd.f32 %v1706, %v1707
        %1741 = vadd.xlane.f32.xlu0 %v1740
        %v1742 = vpop.xlane.xlu0 %1741
        %v1743 = vadd.f32 %v1708, %v1709
        %1744 = vadd.xlane.f32.xlu0 %v1743
        %v1745 = vpop.xlane.xlu0 %1744
        %v1746 = vadd.f32 %v1710, %v1711
        %1747 = vadd.xlane.f32.xlu0 %v1746
        %v1748 = vpop.xlane.xlu0 %1747
        %v1749 = vadd.f32 %v1712, %v1713
        %1750 = vadd.xlane.f32.xlu0 %v1749
        %v1751 = vpop.xlane.xlu0 %1750
        %v1752 = vadd.f32 %v1714, %v1715
        %1753 = vadd.xlane.f32.xlu0 %v1752
        %v1754 = vpop.xlane.xlu0 %1753
        %v1755 = vadd.f32 %v1716, %v1717
        %1756 = vadd.xlane.f32.xlu0 %v1755
        %v1757 = vpop.xlane.xlu0 %1756
        %v1758 = vadd.f32 %v1718, %v1719
        %1759 = vadd.xlane.f32.xlu0 %v1758
        %v1760 = vpop.xlane.xlu0 %1759
        %v1761 = vadd.f32 %v1720, %v1721
        %1762 = vadd.xlane.f32.xlu0 %v1761
        %v1763 = vpop.xlane.xlu0 %1762
        %v1764 = vadd.f32 %v1722, %v1723
        %1765 = vadd.xlane.f32.xlu0 %v1764
        %v1766 = vpop.xlane.xlu0 %1765
        %v1767 = vadd.f32 %v1724, %v1725
        %1768 = vadd.xlane.f32.xlu0 %v1767
        %v1769 = vpop.xlane.xlu0 %1768
        %v1770 = vadd.f32 %v1726, %v1727
        %1771 = vadd.xlane.f32.xlu0 %v1770
        %v1772 = vpop.xlane.xlu0 %1771
        %v1773 = vadd.f32 %v1728, %v1729
        %1774 = vadd.xlane.f32.xlu0 %v1773
        %v1775 = vpop.xlane.xlu0 %1774
        %v1776 = vadd.f32 %v1730, %v1731
        %1777 = vadd.xlane.f32.xlu0 %v1776
        %v1778 = vpop.xlane.xlu0 %1777
        %v1779 = vadd.f32 %v1732, %v1733
        %1780 = vadd.xlane.f32.xlu0 %v1779
        %v1781 = vpop.xlane.xlu0 %1780
        %v1782 = vrcp.pop %v1736
        %v1783 = vrcp.pop %v1739
        %v1784 = vrcp.pop %v1742
        %v1785 = vrcp.pop %v1745
        %v1786 = vrcp.pop %v1748
        %v1787 = vrcp.pop %v1751
        %v1788 = vrcp.pop %v1754
        %v1789 = vrcp.pop %v1757
        %v1790 = vrcp.pop %v1760
        %v1791 = vrcp.pop %v1763
        %v1792 = vrcp.pop %v1766
        %v1793 = vrcp.pop %v1769
        %v1794 = vrcp.pop %v1772
        %v1795 = vrcp.pop %v1775
        %v1796 = vrcp.pop %v1778
        %v1797 = vrcp.pop %v1781
        %v1798 = vmul.f32 %v1702, %v1782
        %v1799 = vmul.f32 %v1703, %v1782
        %v1800 = vmul.f32 %v1704, %v1783
        %v1801 = vmul.f32 %v1705, %v1783
        %v1802 = vmul.f32 %v1706, %v1784
        %v1803 = vmul.f32 %v1707, %v1784
        %v1804 = vmul.f32 %v1708, %v1785
        %v1805 = vmul.f32 %v1709, %v1785
        %v1806 = vmul.f32 %v1710, %v1786
        %v1807 = vmul.f32 %v1711, %v1786
        %v1808 = vmul.f32 %v1712, %v1787
        %v1809 = vmul.f32 %v1713, %v1787
        %v1810 = vmul.f32 %v1714, %v1788
        %v1811 = vmul.f32 %v1715, %v1788
        %v1812 = vmul.f32 %v1716, %v1789
        %v1813 = vmul.f32 %v1717, %v1789
        %v1814 = vmul.f32 %v1718, %v1790
        %v1815 = vmul.f32 %v1719, %v1790
        %v1816 = vmul.f32 %v1720, %v1791
        %v1817 = vmul.f32 %v1721, %v1791
        %v1818 = vmul.f32 %v1722, %v1792
        %v1819 = vmul.f32 %v1723, %v1792
        %v1820 = vmul.f32 %v1724, %v1793
        %v1821 = vmul.f32 %v1725, %v1793
        %v1822 = vmul.f32 %v1726, %v1794
        %v1823 = vmul.f32 %v1727, %v1794
        %v1824 = vmul.f32 %v1728, %v1795
        %v1825 = vmul.f32 %v1729, %v1795
        %v1826 = vmul.f32 %v1730, %v1796
        %v1827 = vmul.f32 %v1731, %v1796
        %v1828 = vmul.f32 %v1732, %v1797
        %v1829 = vmul.f32 %v1733, %v1797
        %v1830 = vpack.c.bf16 %v1800, %v1798
        %v1831 = vpack.c.bf16 %v1801, %v1799
        %v1832 = vpack.c.bf16 %v1804, %v1802
        %v1833 = vpack.c.bf16 %v1805, %v1803
        %v1834 = vpack.c.bf16 %v1808, %v1806
        %v1835 = vpack.c.bf16 %v1809, %v1807
        %v1836 = vpack.c.bf16 %v1812, %v1810
        %v1837 = vpack.c.bf16 %v1813, %v1811
        %v1838 = vpack.c.bf16 %v1816, %v1814
        %v1839 = vpack.c.bf16 %v1817, %v1815
        %v1840 = vpack.c.bf16 %v1820, %v1818
        %v1841 = vpack.c.bf16 %v1821, %v1819
        %v1842 = vpack.c.bf16 %v1824, %v1822
        %v1843 = vpack.c.bf16 %v1825, %v1823
        %v1844 = vpack.c.bf16 %v1828, %v1826
        %v1845 = vpack.c.bf16 %v1829, %v1827
        %v1862 = vunpack.c.l.b16 %v1830
        %v1863 = vunpack.c.l.b16 %v1831
        %v1864 = vunpack.c.h.b16 %v1830
        %v1865 = vunpack.c.h.b16 %v1831
        %v1866 = vunpack.c.l.b16 %v1832
        %v1867 = vunpack.c.l.b16 %v1833
        %v1868 = vunpack.c.h.b16 %v1832
        %v1869 = vunpack.c.h.b16 %v1833
        %v1870 = vunpack.c.l.b16 %v1834
        %v1871 = vunpack.c.l.b16 %v1835
        %v1872 = vunpack.c.h.b16 %v1834
        %v1873 = vunpack.c.h.b16 %v1835
        %v1874 = vunpack.c.l.b16 %v1836
        %v1875 = vunpack.c.l.b16 %v1837
        %v1876 = vunpack.c.h.b16 %v1836
        %v1877 = vunpack.c.h.b16 %v1837
        %v1878 = vunpack.c.l.b16 %v1838
        %v1879 = vunpack.c.l.b16 %v1839
        %v1880 = vunpack.c.h.b16 %v1838
        %v1881 = vunpack.c.h.b16 %v1839
        %v1882 = vunpack.c.l.b16 %v1840
        %v1883 = vunpack.c.l.b16 %v1841
        %v1884 = vunpack.c.h.b16 %v1840
        %v1885 = vunpack.c.h.b16 %v1841
        %v1886 = vunpack.c.l.b16 %v1842
        %v1887 = vunpack.c.l.b16 %v1843
        %v1888 = vunpack.c.h.b16 %v1842
        %v1889 = vunpack.c.h.b16 %v1843
        %v1890 = vunpack.c.l.b16 %v1844
        %v1891 = vunpack.c.l.b16 %v1845
        %v1892 = vunpack.c.h.b16 %v1844
        %v1893 = vunpack.c.h.b16 %v1845
        %v1894 = vpack.c.b16 %v1863, %v1862
        %v1895 = vpack.c.b16 %v1865, %v1864
        %v1896 = vpack.c.b16 %v1867, %v1866
        %v1897 = vpack.c.b16 %v1869, %v1868
        %v1898 = vpack.c.b16 %v1871, %v1870
        %v1899 = vpack.c.b16 %v1873, %v1872
        %v1900 = vpack.c.b16 %v1875, %v1874
        %v1901 = vpack.c.b16 %v1877, %v1876
        %v1902 = vpack.c.b16 %v1879, %v1878
        %v1903 = vpack.c.b16 %v1881, %v1880
        %v1904 = vpack.c.b16 %v1883, %v1882
        %v1905 = vpack.c.b16 %v1885, %v1884
        %v1906 = vpack.c.b16 %v1887, %v1886
        %v1907 = vpack.c.b16 %v1889, %v1888
        %v1908 = vpack.c.b16 %v1891, %v1890
        %v1909 = vpack.c.b16 %v1893, %v1892
        %1926 = vst [vmem:[%s495] sm:$0xff] %v1894
        %1927 = vst [vmem:[%s495 + $0x8] sm:$0xff] %v1895
        %1928 = vst [vmem:[%s495 + $0x10] sm:$0xff] %v1896
        %1929 = vst [vmem:[%s495 + $0x18] sm:$0xff] %v1897
        %1930 = vst [vmem:[%s495 + $0x20] sm:$0xff] %v1898
        %1931 = vst [vmem:[%s495 + $0x28] sm:$0xff] %v1899
        %1932 = vst [vmem:[%s495 + $0x30] sm:$0xff] %v1900
        %1933 = vst [vmem:[%s495 + $0x38] sm:$0xff] %v1901
        %1934 = vst [vmem:[%s495 + $0x40] sm:$0xff] %v1902
        %1935 = vst [vmem:[%s495 + $0x48] sm:$0xff] %v1903
        %1936 = vst [vmem:[%s495 + $0x50] sm:$0xff] %v1904
        %1937 = vst [vmem:[%s495 + $0x58] sm:$0xff] %v1905
        %1938 = vst [vmem:[%s495 + $0x60] sm:$0xff] %v1906
        %1939 = vst [vmem:[%s495 + $0x68] sm:$0xff] %v1907
        %1940 = vst [vmem:[%s495 + $0x70] sm:$0xff] %v1908
        %1941 = vst [vmem:[%s495 + $0x78] sm:$0xff] %v1909
        %1942 = vst [vmem:[%s502] sm:$0xff] %v979
        %1943 = vst [vmem:[%s502 + $0x8] sm:$0xff] %v985
        %1944 = vst [vmem:[%s502 + $0x10] sm:$0xff] %v991
        %1945 = vst [vmem:[%s502 + $0x18] sm:$0xff] %v997
        %1946 = vst [vmem:[%s502 + $0x20] sm:$0xff] %v1003
        %1947 = vst [vmem:[%s502 + $0x28] sm:$0xff] %v1009
        %1948 = vst [vmem:[%s502 + $0x30] sm:$0xff] %v1015
        %1949 = vst [vmem:[%s502 + $0x38] sm:$0xff] %v1021
        %1950 = vst [vmem:[%s502 + $0x40] sm:$0xff] %v1027
        %1951 = vst [vmem:[%s502 + $0x48] sm:$0xff] %v1033
        %1952 = vst [vmem:[%s502 + $0x50] sm:$0xff] %v1039
        %1953 = vst [vmem:[%s502 + $0x58] sm:$0xff] %v1045
        %1954 = vst [vmem:[%s502 + $0x60] sm:$0xff] %v1051
        %1955 = vst [vmem:[%s502 + $0x68] sm:$0xff] %v1057
        %1956 = vst [vmem:[%s502 + $0x70] sm:$0xff] %v1063
        %1957 = vst [vmem:[%s502 + $0x78] sm:$0xff] %v1069
        %1958 = vst [vmem:[%s509] sm:$0xff] %v981
        %1959 = vst [vmem:[%s509 + $0x8] sm:$0xff] %v987
        %1960 = vst [vmem:[%s509 + $0x10] sm:$0xff] %v993
        %1961 = vst [vmem:[%s509 + $0x18] sm:$0xff] %v999
        %1962 = vst [vmem:[%s509 + $0x20] sm:$0xff] %v1005
        %1963 = vst [vmem:[%s509 + $0x28] sm:$0xff] %v1011
        %1964 = vst [vmem:[%s509 + $0x30] sm:$0xff] %v1017
        %1965 = vst [vmem:[%s509 + $0x38] sm:$0xff] %v1023
        %1966 = vst [vmem:[%s509 + $0x40] sm:$0xff] %v1029
        %1967 = vst [vmem:[%s509 + $0x48] sm:$0xff] %v1035
        %1968 = vst [vmem:[%s509 + $0x50] sm:$0xff] %v1041
        %1969 = vst [vmem:[%s509 + $0x58] sm:$0xff] %v1047
        %1970 = vst [vmem:[%s509 + $0x60] sm:$0xff] %v1053
        %1971 = vst [vmem:[%s509 + $0x68] sm:$0xff] %v1059
        %1972 = vst [vmem:[%s509 + $0x70] sm:$0xff] %v1065
        %1973 = vst [vmem:[%s509 + $0x78] sm:$0xff] %v1071
        %1974 = vst [vmem:[%s516] sm:$0xff] %v1313
        %1975 = vst [vmem:[%s516 + $0x8] sm:$0xff] %v1314
        %1976 = vst [vmem:[%s516 + $0x10] sm:$0xff] %v1315
        %1977 = vst [vmem:[%s516 + $0x18] sm:$0xff] %v1316
        %1978 = vst [vmem:[%s516 + $0x20] sm:$0xff] %v1317
        %1979 = vst [vmem:[%s516 + $0x28] sm:$0xff] %v1318
        %1980 = vst [vmem:[%s516 + $0x30] sm:$0xff] %v1319
        %1981 = vst [vmem:[%s516 + $0x38] sm:$0xff] %v1320
        %1982 = vst [vmem:[%s516 + $0x40] sm:$0xff] %v1321
        %1983 = vst [vmem:[%s516 + $0x48] sm:$0xff] %v1322
        %1984 = vst [vmem:[%s516 + $0x50] sm:$0xff] %v1323
        %1985 = vst [vmem:[%s516 + $0x58] sm:$0xff] %v1324
        %1986 = vst [vmem:[%s516 + $0x60] sm:$0xff] %v1325
        %1987 = vst [vmem:[%s516 + $0x68] sm:$0xff] %v1326
        %1988 = vst [vmem:[%s516 + $0x70] sm:$0xff] %v1327
        %1989 = vst [vmem:[%s516 + $0x78] sm:$0xff] %v1328
        %s1990 = sand.u32 %s225, 1
        %s1991 = scalar_lea.sflag [#allocation4], %s1990
        %s1992 = sand.u32 %s225, 1
        %s1993 = smul.addr %s1992, 128
        %s1994 = scalar_lea.vmem [#allocation11], %s1993
        %s1995 = sand.u32 %s39, 1
        %s1996 = scalar_lea.sflag [#allocation13], %s1995
        %s1997 = sand.u32 %s251, 1
        %s1998 = smul.addr %s1997, 128
        %s1999 = scalar_lea.vmem [#allocation12], %s1998
        %s2000 = sand.u32 %s39, 1
        %s2001 = scalar_lea.sflag [#allocation13], %s2000
        %s2002 = sand.u32 %s277, 1
        %s2003 = smul.addr %s2002, 128
        %s2004 = scalar_lea.vmem [#allocation14], %s2003
        %s2005 = sand.u32 %s303, 1
        %s2006 = scalar_lea.sflag [#allocation16], %s2005
        %s2007 = sand.u32 %s303, 1
        %s2008 = smul.addr %s2007, 128
        %s2009 = scalar_lea.vmem [#allocation15], %s2008
        // Predicated region
        $region73: #{tpu_custom_call.1} parent=51 // pred_check
          %p2010 = pneg %p235
        $region74: #{tpu_custom_call.1} parent=51 // pred_check_branch
          %2012 = sbr.rel (%p2010) target = $region76
        $region75: #{tpu_custom_call.1} parent=51 // pred_region
          %s2013 = smul.u32 16, %s39
          %s2015 = ssub.s32 2048, 2048
          %2016 = vsyncadd %s1991, %s2015
          %s2017 = smul.addr %s2013, 2
          %s2018 = smul.addr %s2017, 64
          %s2019 = scalar_lea.hbm %s8, %s2018
          %s2020 = sshll.u32 %s1994, 4
          %s2021 = int_to_ptr.vmem [resolvable:$true] %s2020
          %2026 = dma.vmem_to_hbm [thread:$0]  %s2021, 2048, %s2019, %s1991, 128, 128, 8
        $region76: #{tpu_custom_call.1} parent=51 // pred_fallthru
          _
        // Predicated region
        $region77: #{tpu_custom_call.1} parent=51 // pred_check
          %p2027 = pneg %p261
        $region78: #{tpu_custom_call.1} parent=51 // pred_check_branch
          %2029 = sbr.rel (%p2027) target = $region80
        $region79: #{tpu_custom_call.1} parent=51 // pred_region
          %s2030 = smul.u32 16, %s39
          %s2032 = ssub.s32 2048, 2048
          %2033 = vsyncadd %s1996, %s2032
          %s2034 = smul.addr %s2030, 128
          %s2035 = scalar_lea.hbm %s9, %s2034
          %s2036 = sshll.u32 %s1999, 4
          %s2037 = int_to_ptr.vmem [resolvable:$true] %s2036
          %2042 = dma.vmem_to_hbm [thread:$0]  %s2037, 2048, %s2035, %s1996, 128, 128, 8
        $region80: #{tpu_custom_call.1} parent=51 // pred_fallthru
          _
        // Predicated region
        $region81: #{tpu_custom_call.1} parent=51 // pred_check
          %p2043 = pneg %p287
        $region82: #{tpu_custom_call.1} parent=51 // pred_check_branch
          %2045 = sbr.rel (%p2043) target = $region84
        $region83: #{tpu_custom_call.1} parent=51 // pred_region
          %s2046 = smul.u32 16, %s39
          %s2048 = ssub.s32 2048, 2048
          %2049 = vsyncadd %s2001, %s2048
          %s2050 = smul.addr %s2046, 128
          %s2051 = scalar_lea.hbm %s10, %s2050
          %s2052 = sshll.u32 %s2004, 4
          %s2053 = int_to_ptr.vmem [resolvable:$true] %s2052
          %2058 = dma.vmem_to_hbm [thread:$0]  %s2053, 2048, %s2051, %s2001, 128, 128, 8
        $region84: #{tpu_custom_call.1} parent=51 // pred_fallthru
          _
        // Predicated region
        $region85: #{tpu_custom_call.1} parent=51 // pred_check
          %p2059 = pneg %p313
        $region86: #{tpu_custom_call.1} parent=51 // pred_check_branch
          %2061 = sbr.rel (%p2059) target = $region88
        $region87: #{tpu_custom_call.1} parent=51 // pred_region
          %s2062 = smul.u32 16, %s39
          %s2064 = ssub.s32 2048, 2048
          %2065 = vsyncadd %s2006, %s2064
          %s2066 = smul.addr %s2062, 128
          %s2067 = scalar_lea.hbm %s11, %s2066
          %s2068 = sshll.u32 %s2009, 4
          %s2069 = int_to_ptr.vmem [resolvable:$true] %s2068
          %2074 = dma.vmem_to_hbm [thread:$0]  %s2069, 2048, %s2067, %s2006, 128, 128, 8
        $region88: #{tpu_custom_call.1} parent=51 // pred_fallthru
          _
      $region52: #{tpu_custom_call.1} parent=5 // pred_fallthru
        _
      %p2075 = scmp.le.s32.totalorder 2, %s34
      // Predicated region
      $region89: #{tpu_custom_call.1} parent=5 // pred_check
        %p2076 = pneg %p2075
      $region90: #{tpu_custom_call.1} parent=5 // pred_check_branch
        %2078 = sbr.rel (%p2076) target = $region92
      $region91: #{tpu_custom_call.1} parent=5 // pred_region
        %s2079 = ssub.s32 %s34, 2
        // Predicated region
        $region93: #{tpu_custom_call.1} parent=91 // pred_check
          %p2080 = pneg %p241
        $region94: #{tpu_custom_call.1} parent=91 // pred_check_branch
          %2082 = sbr.rel (%p2080) target = $region96
        $region95: #{tpu_custom_call.1} parent=91 // pred_region
          %s2083 = sand.u32 %s226, 1
          %s2084 = scalar_lea.sflag [#allocation4], %s2083
          %s2085 = sand.u32 %s226, 1
          %s2086 = smul.addr %s2085, 128
          %s2087 = scalar_lea.vmem [#allocation11], %s2086
          %2088 = dma.done %s2084, 2048
        $region96: #{tpu_custom_call.1} parent=91 // pred_fallthru
          _
        // Predicated region
        $region97: #{tpu_custom_call.1} parent=91 // pred_check
          %p2089 = pneg %p267
        $region98: #{tpu_custom_call.1} parent=91 // pred_check_branch
          %2091 = sbr.rel (%p2089) target = $region100
        $region99: #{tpu_custom_call.1} parent=91 // pred_region
          %s2092 = sand.u32 %s40, 1
          %s2093 = scalar_lea.sflag [#allocation13], %s2092
          %s2094 = sand.u32 %s252, 1
          %s2095 = smul.addr %s2094, 128
          %s2096 = scalar_lea.vmem [#allocation12], %s2095
          %2097 = dma.done %s2093, 2048
        $region100: #{tpu_custom_call.1} parent=91 // pred_fallthru
          _
        // Predicated region
        $region101: #{tpu_custom_call.1} parent=91 // pred_check
          %p2098 = pneg %p293
        $region102: #{tpu_custom_call.1} parent=91 // pred_check_branch
          %2100 = sbr.rel (%p2098) target = $region104
        $region103: #{tpu_custom_call.1} parent=91 // pred_region
          %s2101 = sand.u32 %s40, 1
          %s2102 = scalar_lea.sflag [#allocation13], %s2101
          %s2103 = sand.u32 %s278, 1
          %s2104 = smul.addr %s2103, 128
          %s2105 = scalar_lea.vmem [#allocation14], %s2104
          %2106 = dma.done %s2102, 2048
        $region104: #{tpu_custom_call.1} parent=91 // pred_fallthru
          _
        // Predicated region
        $region105: #{tpu_custom_call.1} parent=91 // pred_check
          %p2107 = pneg %p319
        $region106: #{tpu_custom_call.1} parent=91 // pred_check_branch
          %2109 = sbr.rel (%p2107) target = $region108
        $region107: #{tpu_custom_call.1} parent=91 // pred_region
          %s2110 = sand.u32 %s304, 1
          %s2111 = scalar_lea.sflag [#allocation16], %s2110
          %s2112 = sand.u32 %s304, 1
          %s2113 = smul.addr %s2112, 128
          %s2114 = scalar_lea.vmem [#allocation15], %s2113
          %2115 = dma.done %s2111, 2048
        $region108: #{tpu_custom_call.1} parent=91 // pred_fallthru
          _
      $region92: #{tpu_custom_call.1} parent=5 // pred_fallthru
        _
    $region6: #{tpu_custom_call.1} parent=1 // loop_footer
      %s38 = sadd.s32 1, %s34
    $region7: #{tpu_custom_call.1} parent=1 // loop_footer_branch
      %33 = sbr.rel target = $region3
    $region8: #{tpu_custom_call.1} parent=1 // loop_exit
      _
    %2116 = vsyncpa [#allocation3], 1
    %s2117 = scalar_lea.sflag [#allocation3], 1
    %2118 = vsyncpa %s2117, 1
    %2119 = vsyncpa [#allocation6], 1
    %s2120 = scalar_lea.sflag [#allocation6], 1
    %2121 = vsyncpa %s2120, 1
    %2122 = vsyncpa [#allocation9], 1
    %2123 = vsyncpa [#allocation4], 1
    %s2124 = scalar_lea.sflag [#allocation4], 1
    %2125 = vsyncpa %s2124, 1
    %2126 = vsyncpa [#allocation13], 1
    %s2127 = scalar_lea.sflag [#allocation13], 1
    %2128 = vsyncpa %s2127, 1
    %2129 = vsyncpa [#allocation16], 1
    %s2130 = scalar_lea.sflag [#allocation16], 1
    %2131 = vsyncpa %s2130, 1

</llo_original>
